<compile_context>
chip_gen: v7x
topology: tpu7x:2x2x1
jax: 0.10.0
libtpu: 0.0.40
codegen_flags: <defaults>
</compile_context>

<pallas_src>
import functools
import math

import jax
import jax.numpy as jnp
from jax.experimental import pallas as pl
from jax.experimental.pallas import tpu as pltpu

_HALF_LOG_2PI = 0.5 * math.log(2.0 * math.pi)


def _round_up(x, m):
    return ((x + m - 1) // m) * m


def sac_actor_kernel(obs_ref, eps_ref,
                     w1_ref, b1_ref, w2_ref, b2_ref,
                     wh_ref, bh_ref,
                     act_ref, logp_ref, std_ref, *, action_dim):
    """One batch tile: MLP -> fused heads -> tanh-squashed Gaussian sample."""
    A = action_dim
    obs = obs_ref[...]

    # Hidden MLP: Linear -> ReLU -> Linear -> ReLU (f32 accumulation on MXU).
    h1 = jnp.dot(obs, w1_ref[...], preferred_element_type=jnp.float32) + b1_ref[...]
    h1 = jnp.maximum(h1, 0.0)
    h2 = jnp.dot(h1, w2_ref[...], preferred_element_type=jnp.float32) + b2_ref[...]
    h2 = jnp.maximum(h2, 0.0)

    # Fused heads: one (H2, 2*A) matmul, then split into mean / log_std.
    y = jnp.dot(h2, wh_ref[...], preferred_element_type=jnp.float32) + bh_ref[...]
    mean = y[:, :A]
    log_std = jnp.clip(y[:, A:2 * A], -20.0, 2.0)
    std = jnp.exp(log_std)

    # Reparameterized sample + tanh squash.
    eps = eps_ref[...]
    z = mean + std * eps
    action = jnp.tanh(z)

    # Normal(mean, std).log_prob(z) with (z - mean)/std == eps, minus the
    # tanh-squash correction. 3 transcendentals/element -> EUP slot.
    logp_elem = (-0.5 * eps * eps) - log_std - _HALF_LOG_2PI \
        - jnp.log(1.0 - action * action + 1e-6)

    # Direct narrow stores (no packed-slab assembly, no zeros broadcast).
    act_ref[...] = action
    logp_ref[...] = jnp.sum(logp_elem, axis=-1, keepdims=True)
    std_ref[...] = std


def sac_actor_forward(obs, eps, params, *, tile_rows=2048):
    """Stochastic SAC_Actor forward. Returns (action, log_prob, std)."""
    B, obs_dim = obs.shape
    A = eps.shape[1]
    H1 = params["w1"].shape[1]
    H2 = params["w2"].shape[1]

    # Fused head weights are precomputed at init; fall back to concat if absent.
    wh = params.get("wh")
    bh = params.get("bh")
    if wh is None or bh is None:
        wh = jnp.concatenate([params["wm"], params["ws"]], axis=1)
        bh = jnp.concatenate([params["bm"], params["bs"]], axis=1)

    # Batch tile: multiple of 8 sublanes, capped at tile_rows, and chosen so
    # the grid has >= 2 steps whenever B > 8 (keeps both v7x TensorCores busy
    # via the "parallel" batch axis). No host-side padding: Pallas masks the
    # partial last block's writes.
    TB = min(_round_up(max(tile_rows, 8), 8),
             max(_round_up(pl.cdiv(B, 2), 8), 8))
    num_tiles = pl.cdiv(B, TB)

    # Explicit scoped-VMEM budget: double-buffered I/O tiles + resident weights
    # + intermediate headroom, clamped to [16 MiB, 48 MiB] (<= v7x 64 MiB/TC).
    f32 = 4
    io_bytes = 2 * TB * (obs_dim + A) * f32
    out_bytes = 2 * TB * (2 * A + 1) * f32
    w_bytes = 2 * (obs_dim * H1 + H1 + H1 * H2 + H2 + H2 * 2 * A + 2 * A) * f32
    act_bytes = TB * (H1 + H2 + 8 * A) * f32
    vmem_limit = int(min(max(2 * (io_bytes + out_bytes + w_bytes + act_bytes),
                             16 << 20), 48 << 20))

    const = lambda i: (0, 0)          # weights/biases resident across the grid
    row = lambda i: (i, 0)            # batch-tiled arrays

    action, log_prob, std = pl.pallas_call(
        functools.partial(sac_actor_kernel, action_dim=A),
        out_shape=(
            jax.ShapeDtypeStruct((B, A), jnp.float32),   # action
            jax.ShapeDtypeStruct((B, 1), jnp.float32),   # log_prob
            jax.ShapeDtypeStruct((B, A), jnp.float32),   # std
        ),
        grid=(num_tiles,),
        in_specs=[
            pl.BlockSpec((TB, obs_dim), row),     # obs
            pl.BlockSpec((TB, A), row),           # eps
            pl.BlockSpec((obs_dim, H1), const),   # w1
            pl.BlockSpec((1, H1), const),         # b1
            pl.BlockSpec((H1, H2), const),        # w2
            pl.BlockSpec((1, H2), const),         # b2
            pl.BlockSpec((H2, 2 * A), const),     # fused head weight [wm|ws]
            pl.BlockSpec((1, 2 * A), const),      # fused head bias   [bm|bs]
        ],
        out_specs=(
            pl.BlockSpec((TB, A), row),
            pl.BlockSpec((TB, 1), row),
            pl.BlockSpec((TB, A), row),
        ),
        compiler_params=pltpu.CompilerParams(
            dimension_semantics=("parallel",),
            vmem_limit_bytes=vmem_limit),
    )(obs, eps,
      params["w1"], params["b1"], params["w2"], params["b2"], wh, bh)

    return action, log_prob, std


def init_sac_actor_params(key, obs_dim, action_dim, hidden_dims, log_std_init=-3.0):
    """Deterministic init mirroring SAC_Actor._init_weights (weights stored (in, out))."""
    ks = jax.random.split(key, 4)
    params = {}

    # Hidden layers: kaiming_uniform (nonlinearity='relu') -> bound = sqrt(6 / fan_in).
    dims = [obs_dim] + list(hidden_dims)
    for i, (fan_in, fan_out) in enumerate(zip(dims[:-1], dims[1:]), start=1):
        bound = math.sqrt(6.0 / fan_in)
        params[f"w{i}"] = jax.random.uniform(
            ks[i - 1], (fan_in, fan_out), jnp.float32, -bound, bound)
        params[f"b{i}"] = jnp.zeros((1, fan_out), jnp.float32)

    last = dims[-1]
    params["wm"] = jax.random.uniform(
        ks[2], (last, action_dim), jnp.float32, -0.003, 0.003)
    params["bm"] = jnp.zeros((1, action_dim), jnp.float32)
    params["ws"] = jax.random.uniform(
        ks[3], (last, action_dim), jnp.float32, -0.003, 0.003)
    params["bs"] = jnp.full((1, action_dim), log_std_init, jnp.float32)

    # Fused head (hoisted out of the per-step forward call).
    params["wh"] = jnp.concatenate([params["wm"], params["ws"]], axis=1)
    params["bh"] = jnp.concatenate([params["bm"], params["bs"]], axis=1)
    return params


def _reference_forward(obs, eps, params):
    """Pure-JAX reference of the same forward (sanity check)."""
    hp = jax.lax.Precision.HIGHEST
    h1 = jnp.maximum(jnp.dot(obs, params["w1"], precision=hp) + params["b1"], 0.0)
    h2 = jnp.maximum(jnp.dot(h1, params["w2"], precision=hp) + params["b2"], 0.0)
    mean = jnp.dot(h2, params["wm"], precision=hp) + params["bm"]
    log_std = jnp.clip(jnp.dot(h2, params["ws"], precision=hp) + params["bs"],
                       -20.0, 2.0)
    std = jnp.exp(log_std)
    z = mean + std * eps
    action = jnp.tanh(z)
    logp = (-0.5 * eps * eps) - log_std - _HALF_LOG_2PI \
        - jnp.log(1.0 - action * action + 1e-6)
    return action, jnp.sum(logp, axis=-1, keepdims=True), std


if __name__ == "__main__":
    # Small demo shapes. NOTE: at tiny batches this is launch/DMA-overhead
    # dominated; the tiling only pays off for training-sized batches.
    B, OBS_DIM, ACTION_DIM = 200, 48, 12        # B not a multiple of TB on purpose
    HIDDEN = [64, 64]

    key = jax.random.PRNGKey(0)
    k_param, k_obs, k_eps = jax.random.split(key, 3)

    params = init_sac_actor_params(k_param, OBS_DIM, ACTION_DIM, HIDDEN,
                                   log_std_init=-3.0)
    obs = jax.random.normal(k_obs, (B, OBS_DIM), jnp.float32)
    eps = jax.random.normal(k_eps, (B, ACTION_DIM), jnp.float32)  # rsample noise

    action, log_prob, std = sac_actor_forward(obs, eps, params)
    jax.block_until_ready((action, log_prob, std))

    assert action.shape == (B, ACTION_DIM)
    assert log_prob.shape == (B, 1)
    assert std.shape == (B, ACTION_DIM)
    assert bool(jnp.all(jnp.isfinite(action)))
    assert bool(jnp.all(jnp.isfinite(log_prob)))
    assert bool(jnp.all(jnp.isfinite(std)))

    # Loose numerical check against a pure-JAX reference (covers MXU
    # default-precision rounding differences).
    ra, rl, rs = _reference_forward(obs, eps, params)
    assert bool(jnp.max(jnp.abs(action - ra)) < 1e-3)
    assert bool(jnp.max(jnp.abs(log_prob - rl)) < 2e-3)
    assert bool(jnp.max(jnp.abs(std - rs)) < 1e-3)

    print("KERNEL_OK")
</pallas_src>

<mosaic_0001>
module attributes {stable_mosaic.version = 11 : i64} {
  func.func @sac_actor_kernel(%arg0: i32, %arg1: memref<104x48xf32, #tpu.memory_space<vmem>>, %arg2: memref<104x12xf32, #tpu.memory_space<vmem>>, %arg3: memref<48x64xf32, #tpu.memory_space<vmem>>, %arg4: memref<1x64xf32, #tpu.memory_space<vmem>>, %arg5: memref<64x64xf32, #tpu.memory_space<vmem>>, %arg6: memref<1x64xf32, #tpu.memory_space<vmem>>, %arg7: memref<64x24xf32, #tpu.memory_space<vmem>>, %arg8: memref<1x24xf32, #tpu.memory_space<vmem>>, %arg9: memref<104x12xf32, #tpu.memory_space<vmem>>, %arg10: memref<104x1xf32, #tpu.memory_space<vmem>>, %arg11: memref<104x12xf32, #tpu.memory_space<vmem>>) attributes {dimension_semantics = [#tpu.dimension_semantics<parallel>], iteration_bounds = array<i64: 2>, scalar_prefetch = 0 : i64, scratch_operands = 0 : i64, tpu.core_type = #tpu.core_type<tc>, window_params = [{transform_indices = @transform_0, window_bounds = array<i64: 104, 48>}, {transform_indices = @transform_1, window_bounds = array<i64: 104, 12>}, {pipeline_mode = #tpu.pipeline_mode<synchronous>, transform_indices = @transform_2, window_bounds = array<i64: 48, 64>}, {pipeline_mode = #tpu.pipeline_mode<synchronous>, transform_indices = @transform_3, window_bounds = array<i64: 1, 64>}, {pipeline_mode = #tpu.pipeline_mode<synchronous>, transform_indices = @transform_4, window_bounds = array<i64: 64, 64>}, {pipeline_mode = #tpu.pipeline_mode<synchronous>, transform_indices = @transform_5, window_bounds = array<i64: 1, 64>}, {pipeline_mode = #tpu.pipeline_mode<synchronous>, transform_indices = @transform_6, window_bounds = array<i64: 64, 24>}, {pipeline_mode = #tpu.pipeline_mode<synchronous>, transform_indices = @transform_7, window_bounds = array<i64: 1, 24>}, {transform_indices = @transform_8, window_bounds = array<i64: 104, 12>}, {transform_indices = @transform_9, window_bounds = array<i64: 104, 1>}, {transform_indices = @transform_10, window_bounds = array<i64: 104, 12>}]} {
    %c0 = arith.constant 0 : index
    %c0_0 = arith.constant 0 : index
    %0 = vector.load %arg1[%c0, %c0_0] : memref<104x48xf32, #tpu.memory_space<vmem>>, vector<104x48xf32>
    %c0_1 = arith.constant 0 : index
    %c0_2 = arith.constant 0 : index
    %1 = vector.load %arg3[%c0_1, %c0_2] : memref<48x64xf32, #tpu.memory_space<vmem>>, vector<48x64xf32>
    %cst = arith.constant dense<0.000000e+00> : vector<104x64xf32>
    %2 = tpu.matmul %0, %1, %cst {dimension_numbers = #tpu.dot_dimension_numbers<[1], [0], [0], [1], [0, 0, 1, 1], [], []>} : vector<104x48xf32>, vector<48x64xf32>, vector<104x64xf32> -> vector<104x64xf32>
    %c0_3 = arith.constant 0 : index
    %c0_4 = arith.constant 0 : index
    %3 = vector.load %arg4[%c0_3, %c0_4] : memref<1x64xf32, #tpu.memory_space<vmem>>, vector<1x64xf32>
    %4 = vector.broadcast %3 : vector<1x64xf32> to vector<104x64xf32>
    %5 = arith.addf %2, %4 : vector<104x64xf32>
    %cst_5 = arith.constant 0.000000e+00 : f32
    %6 = vector.broadcast %cst_5 : f32 to vector<104x64xf32>
    %7 = arith.maximumf %5, %6 : vector<104x64xf32>
    %c0_6 = arith.constant 0 : index
    %c0_7 = arith.constant 0 : index
    %8 = vector.load %arg5[%c0_6, %c0_7] : memref<64x64xf32, #tpu.memory_space<vmem>>, vector<64x64xf32>
    %cst_8 = arith.constant dense<0.000000e+00> : vector<104x64xf32>
    %9 = tpu.matmul %7, %8, %cst_8 {dimension_numbers = #tpu.dot_dimension_numbers<[1], [0], [0], [1], [0, 0, 1, 1], [], []>} : vector<104x64xf32>, vector<64x64xf32>, vector<104x64xf32> -> vector<104x64xf32>
    %c0_9 = arith.constant 0 : index
    %c0_10 = arith.constant 0 : index
    %10 = vector.load %arg6[%c0_9, %c0_10] : memref<1x64xf32, #tpu.memory_space<vmem>>, vector<1x64xf32>
    %11 = vector.broadcast %10 : vector<1x64xf32> to vector<104x64xf32>
    %12 = arith.addf %9, %11 : vector<104x64xf32>
    %cst_11 = arith.constant 0.000000e+00 : f32
    %13 = vector.broadcast %cst_11 : f32 to vector<104x64xf32>
    %14 = arith.maximumf %12, %13 : vector<104x64xf32>
    %c0_12 = arith.constant 0 : index
    %c0_13 = arith.constant 0 : index
    %15 = vector.load %arg7[%c0_12, %c0_13] : memref<64x24xf32, #tpu.memory_space<vmem>>, vector<64x24xf32>
    %cst_14 = arith.constant dense<0.000000e+00> : vector<104x24xf32>
    %16 = tpu.matmul %14, %15, %cst_14 {dimension_numbers = #tpu.dot_dimension_numbers<[1], [0], [0], [1], [0, 0, 1, 1], [], []>} : vector<104x64xf32>, vector<64x24xf32>, vector<104x24xf32> -> vector<104x24xf32>
    %c0_15 = arith.constant 0 : index
    %c0_16 = arith.constant 0 : index
    %17 = vector.load %arg8[%c0_15, %c0_16] : memref<1x24xf32, #tpu.memory_space<vmem>>, vector<1x24xf32>
    %18 = vector.broadcast %17 : vector<1x24xf32> to vector<104x24xf32>
    %19 = arith.addf %16, %18 : vector<104x24xf32>
    %20 = vector.extract_strided_slice %19 {offsets = [0, 0], sizes = [104, 12], strides = [1, 1]} : vector<104x24xf32> to vector<104x12xf32>
    %21 = vector.extract_strided_slice %19 {offsets = [0, 12], sizes = [104, 12], strides = [1, 1]} : vector<104x24xf32> to vector<104x12xf32>
    %cst_17 = arith.constant -2.000000e+01 : f32
    %cst_18 = arith.constant 2.000000e+00 : f32
    %22 = vector.broadcast %cst_17 : f32 to vector<104x12xf32>
    %23 = arith.maximumf %22, %21 : vector<104x12xf32>
    %24 = vector.broadcast %cst_18 : f32 to vector<104x12xf32>
    %25 = arith.minimumf %24, %23 : vector<104x12xf32>
    %26 = math.exp %25 : vector<104x12xf32>
    %c0_19 = arith.constant 0 : index
    %c0_20 = arith.constant 0 : index
    %27 = vector.load %arg2[%c0_19, %c0_20] : memref<104x12xf32, #tpu.memory_space<vmem>>, vector<104x12xf32>
    %28 = arith.mulf %26, %27 : vector<104x12xf32>
    %29 = arith.addf %20, %28 : vector<104x12xf32>
    %30 = math.tanh %29 : vector<104x12xf32>
    %cst_21 = arith.constant -5.000000e-01 : f32
    %31 = vector.broadcast %cst_21 : f32 to vector<104x12xf32>
    %32 = arith.mulf %31, %27 : vector<104x12xf32>
    %33 = arith.mulf %32, %27 : vector<104x12xf32>
    %34 = arith.subf %33, %25 : vector<104x12xf32>
    %cst_22 = arith.constant 0.918938517 : f32
    %35 = vector.broadcast %cst_22 : f32 to vector<104x12xf32>
    %36 = arith.subf %34, %35 : vector<104x12xf32>
    %37 = arith.mulf %30, %30 : vector<104x12xf32>
    %cst_23 = arith.constant 1.000000e+00 : f32
    %38 = vector.broadcast %cst_23 : f32 to vector<104x12xf32>
    %39 = arith.subf %38, %37 : vector<104x12xf32>
    %cst_24 = arith.constant 9.99999997E-7 : f32
    %40 = vector.broadcast %cst_24 : f32 to vector<104x12xf32>
    %41 = arith.addf %39, %40 : vector<104x12xf32>
    %42 = math.log %41 : vector<104x12xf32>
    %43 = arith.subf %36, %42 : vector<104x12xf32>
    %c0_25 = arith.constant 0 : index
    %c0_26 = arith.constant 0 : index
    %44 = vector.load %arg9[%c0_25, %c0_26] : memref<104x12xf32, #tpu.memory_space<vmem>>, vector<104x12xf32>
    tpu.vector_store %arg9[%c0_25, %c0_26], %30 {strides = array<i32>} : memref<104x12xf32, #tpu.memory_space<vmem>>, vector<104x12xf32>,
    %cst_27 = arith.constant dense<0.000000e+00> : vector<104xf32>
    %45 = vector.multi_reduction <add>, %43, %cst_27 [1] : vector<104x12xf32> to vector<104xf32>
    %46 = vector.shape_cast %45 : vector<104xf32> to vector<104x1xf32>
    %c0_28 = arith.constant 0 : index
    %c0_29 = arith.constant 0 : index
    %47 = vector.load %arg10[%c0_28, %c0_29] : memref<104x1xf32, #tpu.memory_space<vmem>>, vector<104x1xf32>
    tpu.vector_store %arg10[%c0_28, %c0_29], %46 {strides = array<i32>} : memref<104x1xf32, #tpu.memory_space<vmem>>, vector<104x1xf32>,
    %c0_30 = arith.constant 0 : index
    %c0_31 = arith.constant 0 : index
    %48 = vector.load %arg11[%c0_30, %c0_31] : memref<104x12xf32, #tpu.memory_space<vmem>>, vector<104x12xf32>
    tpu.vector_store %arg11[%c0_30, %c0_31], %26 {strides = array<i32>} : memref<104x12xf32, #tpu.memory_space<vmem>>, vector<104x12xf32>,
    return
  }
  func.func @transform_0(%arg0: i32) -> (i32, i32) {
    %c0_i32 = arith.constant 0 : i32
    %c0_i32_0 = arith.constant 0 : i32
    return %arg0, %c0_i32 : i32, i32
  }
  func.func @transform_1(%arg0: i32) -> (i32, i32) {
    %c0_i32 = arith.constant 0 : i32
    %c0_i32_0 = arith.constant 0 : i32
    return %arg0, %c0_i32 : i32, i32
  }
  func.func @transform_2(%arg0: i32) -> (i32, i32) {
    %c0_i32 = arith.constant 0 : i32
    %c0_i32_0 = arith.constant 0 : i32
    %c0_i32_1 = arith.constant 0 : i32
    return %c0_i32, %c0_i32_0 : i32, i32
  }
  func.func @transform_3(%arg0: i32) -> (i32, i32) {
    %c0_i32 = arith.constant 0 : i32
    %c0_i32_0 = arith.constant 0 : i32
    %c0_i32_1 = arith.constant 0 : i32
    return %c0_i32, %c0_i32_0 : i32, i32
  }
  func.func @transform_4(%arg0: i32) -> (i32, i32) {
    %c0_i32 = arith.constant 0 : i32
    %c0_i32_0 = arith.constant 0 : i32
    %c0_i32_1 = arith.constant 0 : i32
    return %c0_i32, %c0_i32_0 : i32, i32
  }
  func.func @transform_5(%arg0: i32) -> (i32, i32) {
    %c0_i32 = arith.constant 0 : i32
    %c0_i32_0 = arith.constant 0 : i32
    %c0_i32_1 = arith.constant 0 : i32
    return %c0_i32, %c0_i32_0 : i32, i32
  }
  func.func @transform_6(%arg0: i32) -> (i32, i32) {
    %c0_i32 = arith.constant 0 : i32
    %c0_i32_0 = arith.constant 0 : i32
    %c0_i32_1 = arith.constant 0 : i32
    return %c0_i32, %c0_i32_0 : i32, i32
  }
  func.func @transform_7(%arg0: i32) -> (i32, i32) {
    %c0_i32 = arith.constant 0 : i32
    %c0_i32_0 = arith.constant 0 : i32
    %c0_i32_1 = arith.constant 0 : i32
    return %c0_i32, %c0_i32_0 : i32, i32
  }
  func.func @transform_8(%arg0: i32) -> (i32, i32) {
    %c0_i32 = arith.constant 0 : i32
    %c0_i32_0 = arith.constant 0 : i32
    return %arg0, %c0_i32 : i32, i32
  }
  func.func @transform_9(%arg0: i32) -> (i32, i32) {
    %c0_i32 = arith.constant 0 : i32
    %c0_i32_0 = arith.constant 0 : i32
    return %arg0, %c0_i32 : i32, i32
  }
  func.func @transform_10(%arg0: i32) -> (i32, i32) {
    %c0_i32 = arith.constant 0 : i32
    %c0_i32_0 = arith.constant 0 : i32
    return %arg0, %c0_i32 : i32, i32
  }
}

</mosaic_0001>

<llo_original>
// kernel: tpu_custom_call.1
$region0: #{tpu_custom_call.1}
  #allocation0 [shape = 'u32[]', space=smem, size = 0x4, offset = 0x4, fixed_abs, tag = 'smem constant byte address 0x4 - core index']
  #allocation1 [shape = 'u32[144,128]{1,0:T(1,128)}', space=vmem, size = 0x12000, scoped, tag = 'internal scratch']
  %s0 = inlined_call_operand.vmem [shape: f32[200,48], index: 0, kind: input, shape index: {}]
  %s1 = inlined_call_operand.vmem [shape: f32[200,12], index: 1, kind: input, shape index: {}]
  %s2 = inlined_call_operand.vmem [shape: f32[48,64], index: 2, kind: input, shape index: {}]
  %s3 = inlined_call_operand.vmem [shape: f32[1,64], index: 3, kind: input, shape index: {}]
  %s4 = inlined_call_operand.vmem [shape: f32[64,64], index: 4, kind: input, shape index: {}]
  %s5 = inlined_call_operand.vmem [shape: f32[1,64], index: 5, kind: input, shape index: {}]
  %s6 = inlined_call_operand.vmem [shape: f32[64,24], index: 6, kind: input, shape index: {}]
  %s7 = inlined_call_operand.vmem [shape: f32[1,24], index: 7, kind: input, shape index: {}]
  %s8 = inlined_call_operand.vmem [shape: f32[200,12], index: 8, kind: output, shape index: {0}]
  %s9 = inlined_call_operand.vmem [shape: f32[200,1], index: 9, kind: output, shape index: {1}]
  %s10 = inlined_call_operand.vmem [shape: f32[200,12], index: 10, kind: output, shape index: {2}]
  %11 = xla_tuple %s8, %s9, %s10
  %s12 = sld [smem:[#allocation0]]
  $region225: #{tpu_custom_call.1} parent=0
    _
  %s14 = ssub.s32 1, %s12
  %s15 = scalar_select 0, %s14, %s12
  $region1: #{tpu_custom_call.1} parent=0
    #allocation2 [shape = 'u8[106496]{0}', space=vmem, size = 0x1a000, scoped, tag = 'output window, operand 0']
    #allocation3 [shape = 'u8[106496]{0}', space=vmem, size = 0x1a000, scoped, tag = 'output window, operand 1']
    #allocation4 [shape = 'u8[106496]{0}', space=vmem, size = 0x1a000, scoped, tag = 'output window, operand 2']
    loop: start=0, step=1, limit=4
    $region2: #{tpu_custom_call.1} parent=1 // loop_pre_header
      _
    $region3: #{tpu_custom_call.1} parent=1 // loop_header
      %s17 = sphi 0, %s21
      %p18 = scmp.ge.s32.totalorder %s17, 4
      %s27 = sphi 0, %s29
      %s30 = sphi 0, %s27
      %s31 = sphi 0, %s30
      %s47 = sphi 0, %s31
      %s53 = sphi 0, %s55
      %s56 = sphi 0, %s53
      %s57 = sphi 0, %s56
      %s73 = sphi 0, %s57
      %s77 = sphi 0, %s77
      %s79 = sphi 0, %s77
      %s80 = sphi 0, %s79
      %s94 = sphi 0, %s80
      %s98 = sphi 0, %s98
      %s100 = sphi 0, %s98
      %s101 = sphi 0, %s100
      %s115 = sphi 0, %s101
      %s119 = sphi 0, %s119
      %s121 = sphi 0, %s119
      %s122 = sphi 0, %s121
      %s136 = sphi 0, %s122
      %s140 = sphi 0, %s140
      %s142 = sphi 0, %s140
      %s143 = sphi 0, %s142
      %s157 = sphi 0, %s143
      %s161 = sphi 0, %s161
      %s163 = sphi 0, %s161
      %s164 = sphi 0, %s163
      %s178 = sphi 0, %s164
      %s182 = sphi 0, %s182
      %s184 = sphi 0, %s182
      %s185 = sphi 0, %s184
      %s199 = sphi 0, %s185
      %s205 = sphi 0, %s207
      %s208 = sphi 0, %s205
      %s209 = sphi 0, %s208
      %s225 = sphi 0, %s209
      %s231 = sphi 0, %s233
      %s234 = sphi 0, %s231
      %s235 = sphi 0, %s234
      %s251 = sphi 0, %s235
      %s257 = sphi 0, %s259
      %s260 = sphi 0, %s257
      %s261 = sphi 0, %s260
      %s277 = sphi 0, %s261
    $region4: #{tpu_custom_call.1} parent=1 // loop_header_branch
      %20 = sbr.rel (%p18) target = $region8
    $region5: #{tpu_custom_call.1} parent=1 // loop_body
      %s22 = ssub.s32 %s17, 1
      %s23 = ssub.s32 %s17, 2
      %s24 = sadd.s32 %s17, 1
      %s25 = ssub.s32 %s17, %s24
      %p26 = scmp.eq.s32.totalorder %s25, 0
      %s28 = sadd.s32 %s27, 1
      %s29 = scalar_select %p26, %s27, %s28
      %p32 = pneg %p26
      %p33 = scmp.eq.s32.totalorder %s17, 1
      %p34 = por %p32, %p33
      %p35 = scmp.ne.s32.totalorder %s27, %s30
      %p36 = scmp.eq.s32.totalorder %s17, 0
      %p37 = por %p35, %p36
      %p38 = scmp.ne.s32.totalorder %s27, %s30
      %p39 = scmp.eq.s32.totalorder %s22, 1
      %p40 = por %p38, %p39
      %p41 = scmp.ne.s32.totalorder %s30, %s31
      %p42 = scmp.eq.s32.totalorder %s22, 0
      %p43 = por %p41, %p42
      %p44 = scmp.ne.s32.totalorder %s30, %s31
      %p45 = scmp.eq.s32.totalorder %s23, 1
      %p46 = por %p44, %p45
      %p48 = scmp.ne.s32.totalorder %s31, %s47
      %p49 = scmp.eq.s32.totalorder %s23, 0
      %p50 = por %p48, %p49
      %s51 = ssub.s32 %s17, %s24
      %p52 = scmp.eq.s32.totalorder %s51, 0
      %s54 = sadd.s32 %s53, 1
      %s55 = scalar_select %p52, %s53, %s54
      %p58 = pneg %p52
      %p59 = scmp.eq.s32.totalorder %s17, 1
      %p60 = por %p58, %p59
      %p61 = scmp.ne.s32.totalorder %s53, %s56
      %p62 = scmp.eq.s32.totalorder %s17, 0
      %p63 = por %p61, %p62
      %p64 = scmp.ne.s32.totalorder %s53, %s56
      %p65 = scmp.eq.s32.totalorder %s22, 1
      %p66 = por %p64, %p65
      %p67 = scmp.ne.s32.totalorder %s56, %s57
      %p68 = scmp.eq.s32.totalorder %s22, 0
      %p69 = por %p67, %p68
      %p70 = scmp.ne.s32.totalorder %s56, %s57
      %p71 = scmp.eq.s32.totalorder %s23, 1
      %p72 = por %p70, %p71
      %p74 = scmp.ne.s32.totalorder %s57, %s73
      %p75 = scmp.eq.s32.totalorder %s23, 0
      %p76 = por %p74, %p75
      %s78 = sadd.s32 %s77, 1
      %p81 = scmp.eq.s32.totalorder %s17, 1
      %p82 = scmp.ne.s32.totalorder %s77, %s79
      %p83 = scmp.eq.s32.totalorder %s17, 0
      %p84 = por %p82, %p83
      %p85 = scmp.ne.s32.totalorder %s77, %s79
      %p86 = scmp.eq.s32.totalorder %s22, 1
      %p87 = por %p85, %p86
      %p88 = scmp.ne.s32.totalorder %s79, %s80
      %p89 = scmp.eq.s32.totalorder %s22, 0
      %p90 = por %p88, %p89
      %p91 = scmp.ne.s32.totalorder %s79, %s80
      %p92 = scmp.eq.s32.totalorder %s23, 1
      %p93 = por %p91, %p92
      %p95 = scmp.ne.s32.totalorder %s80, %s94
      %p96 = scmp.eq.s32.totalorder %s23, 0
      %p97 = por %p95, %p96
      %s99 = sadd.s32 %s98, 1
      %p102 = scmp.eq.s32.totalorder %s17, 1
      %p103 = scmp.ne.s32.totalorder %s98, %s100
      %p104 = scmp.eq.s32.totalorder %s17, 0
      %p105 = por %p103, %p104
      %p106 = scmp.ne.s32.totalorder %s98, %s100
      %p107 = scmp.eq.s32.totalorder %s22, 1
      %p108 = por %p106, %p107
      %p109 = scmp.ne.s32.totalorder %s100, %s101
      %p110 = scmp.eq.s32.totalorder %s22, 0
      %p111 = por %p109, %p110
      %p112 = scmp.ne.s32.totalorder %s100, %s101
      %p113 = scmp.eq.s32.totalorder %s23, 1
      %p114 = por %p112, %p113
      %p116 = scmp.ne.s32.totalorder %s101, %s115
      %p117 = scmp.eq.s32.totalorder %s23, 0
      %p118 = por %p116, %p117
      %s120 = sadd.s32 %s119, 1
      %p123 = scmp.eq.s32.totalorder %s17, 1
      %p124 = scmp.ne.s32.totalorder %s119, %s121
      %p125 = scmp.eq.s32.totalorder %s17, 0
      %p126 = por %p124, %p125
      %p127 = scmp.ne.s32.totalorder %s119, %s121
      %p128 = scmp.eq.s32.totalorder %s22, 1
      %p129 = por %p127, %p128
      %p130 = scmp.ne.s32.totalorder %s121, %s122
      %p131 = scmp.eq.s32.totalorder %s22, 0
      %p132 = por %p130, %p131
      %p133 = scmp.ne.s32.totalorder %s121, %s122
      %p134 = scmp.eq.s32.totalorder %s23, 1
      %p135 = por %p133, %p134
      %p137 = scmp.ne.s32.totalorder %s122, %s136
      %p138 = scmp.eq.s32.totalorder %s23, 0
      %p139 = por %p137, %p138
      %s141 = sadd.s32 %s140, 1
      %p144 = scmp.eq.s32.totalorder %s17, 1
      %p145 = scmp.ne.s32.totalorder %s140, %s142
      %p146 = scmp.eq.s32.totalorder %s17, 0
      %p147 = por %p145, %p146
      %p148 = scmp.ne.s32.totalorder %s140, %s142
      %p149 = scmp.eq.s32.totalorder %s22, 1
      %p150 = por %p148, %p149
      %p151 = scmp.ne.s32.totalorder %s142, %s143
      %p152 = scmp.eq.s32.totalorder %s22, 0
      %p153 = por %p151, %p152
      %p154 = scmp.ne.s32.totalorder %s142, %s143
      %p155 = scmp.eq.s32.totalorder %s23, 1
      %p156 = por %p154, %p155
      %p158 = scmp.ne.s32.totalorder %s143, %s157
      %p159 = scmp.eq.s32.totalorder %s23, 0
      %p160 = por %p158, %p159
      %s162 = sadd.s32 %s161, 1
      %p165 = scmp.eq.s32.totalorder %s17, 1
      %p166 = scmp.ne.s32.totalorder %s161, %s163
      %p167 = scmp.eq.s32.totalorder %s17, 0
      %p168 = por %p166, %p167
      %p169 = scmp.ne.s32.totalorder %s161, %s163
      %p170 = scmp.eq.s32.totalorder %s22, 1
      %p171 = por %p169, %p170
      %p172 = scmp.ne.s32.totalorder %s163, %s164
      %p173 = scmp.eq.s32.totalorder %s22, 0
      %p174 = por %p172, %p173
      %p175 = scmp.ne.s32.totalorder %s163, %s164
      %p176 = scmp.eq.s32.totalorder %s23, 1
      %p177 = por %p175, %p176
      %p179 = scmp.ne.s32.totalorder %s164, %s178
      %p180 = scmp.eq.s32.totalorder %s23, 0
      %p181 = por %p179, %p180
      %s183 = sadd.s32 %s182, 1
      %p186 = scmp.eq.s32.totalorder %s17, 1
      %p187 = scmp.ne.s32.totalorder %s182, %s184
      %p188 = scmp.eq.s32.totalorder %s17, 0
      %p189 = por %p187, %p188
      %p190 = scmp.ne.s32.totalorder %s182, %s184
      %p191 = scmp.eq.s32.totalorder %s22, 1
      %p192 = por %p190, %p191
      %p193 = scmp.ne.s32.totalorder %s184, %s185
      %p194 = scmp.eq.s32.totalorder %s22, 0
      %p195 = por %p193, %p194
      %p196 = scmp.ne.s32.totalorder %s184, %s185
      %p197 = scmp.eq.s32.totalorder %s23, 1
      %p198 = por %p196, %p197
      %p200 = scmp.ne.s32.totalorder %s185, %s199
      %p201 = scmp.eq.s32.totalorder %s23, 0
      %p202 = por %p200, %p201
      %s203 = ssub.s32 %s17, %s24
      %p204 = scmp.eq.s32.totalorder %s203, 0
      %s206 = sadd.s32 %s205, 1
      %s207 = scalar_select %p204, %s205, %s206
      %p210 = pneg %p204
      %p211 = scmp.eq.s32.totalorder %s17, 1
      %p212 = por %p210, %p211
      %p213 = scmp.ne.s32.totalorder %s205, %s208
      %p214 = scmp.eq.s32.totalorder %s17, 0
      %p215 = por %p213, %p214
      %p216 = scmp.ne.s32.totalorder %s205, %s208
      %p217 = scmp.eq.s32.totalorder %s22, 1
      %p218 = por %p216, %p217
      %p219 = scmp.ne.s32.totalorder %s208, %s209
      %p220 = scmp.eq.s32.totalorder %s22, 0
      %p221 = por %p219, %p220
      %p222 = scmp.ne.s32.totalorder %s208, %s209
      %p223 = scmp.eq.s32.totalorder %s23, 1
      %p224 = por %p222, %p223
      %p226 = scmp.ne.s32.totalorder %s209, %s225
      %p227 = scmp.eq.s32.totalorder %s23, 0
      %p228 = por %p226, %p227
      %s229 = ssub.s32 %s17, %s24
      %p230 = scmp.eq.s32.totalorder %s229, 0
      %s232 = sadd.s32 %s231, 1
      %s233 = scalar_select %p230, %s231, %s232
      %p236 = pneg %p230
      %p237 = scmp.eq.s32.totalorder %s17, 1
      %p238 = por %p236, %p237
      %p239 = scmp.ne.s32.totalorder %s231, %s234
      %p240 = scmp.eq.s32.totalorder %s17, 0
      %p241 = por %p239, %p240
      %p242 = scmp.ne.s32.totalorder %s231, %s234
      %p243 = scmp.eq.s32.totalorder %s22, 1
      %p244 = por %p242, %p243
      %p245 = scmp.ne.s32.totalorder %s234, %s235
      %p246 = scmp.eq.s32.totalorder %s22, 0
      %p247 = por %p245, %p246
      %p248 = scmp.ne.s32.totalorder %s234, %s235
      %p249 = scmp.eq.s32.totalorder %s23, 1
      %p250 = por %p248, %p249
      %p252 = scmp.ne.s32.totalorder %s235, %s251
      %p253 = scmp.eq.s32.totalorder %s23, 0
      %p254 = por %p252, %p253
      %s255 = ssub.s32 %s17, %s24
      %p256 = scmp.eq.s32.totalorder %s255, 0
      %s258 = sadd.s32 %s257, 1
      %s259 = scalar_select %p256, %s257, %s258
      %p262 = pneg %p256
      %p263 = scmp.eq.s32.totalorder %s17, 1
      %p264 = por %p262, %p263
      %p265 = scmp.ne.s32.totalorder %s257, %s260
      %p266 = scmp.eq.s32.totalorder %s17, 0
      %p267 = por %p265, %p266
      %p268 = scmp.ne.s32.totalorder %s257, %s260
      %p269 = scmp.eq.s32.totalorder %s22, 1
      %p270 = por %p268, %p269
      %p271 = scmp.ne.s32.totalorder %s260, %s261
      %p272 = scmp.eq.s32.totalorder %s22, 0
      %p273 = por %p271, %p272
      %p274 = scmp.ne.s32.totalorder %s260, %s261
      %p275 = scmp.eq.s32.totalorder %s23, 1
      %p276 = por %p274, %p275
      %p278 = scmp.ne.s32.totalorder %s261, %s277
      %p279 = scmp.eq.s32.totalorder %s23, 0
      %p280 = por %p278, %p279
      %p281 = scmp.le.s32.totalorder 1, %s17
      %p282 = scmp.lt.s32.totalorder %s17, 3
      %p283 = pnand %p281, %p282
      %p284 = pneg %p283
      // Predicated region
      $region9: #{tpu_custom_call.1} parent=5 // pred_check
        _
      $region10: #{tpu_custom_call.1} parent=5 // pred_check_branch
        %286 = sbr.rel (%p283) target = $region12
      $region11: #{tpu_custom_call.1} parent=5 // pred_region
        %s287 = ssub.s32 %s17, 1
        // Predicated region
        $region13: #{tpu_custom_call.1} parent=11 // pred_check
          %p288 = pneg %p90
        $region14: #{tpu_custom_call.1} parent=11 // pred_check_branch
          %290 = sbr.rel (%p288) target = $region16
        $region15: #{tpu_custom_call.1} parent=11 // pred_region
          _
        $region16: #{tpu_custom_call.1} parent=11 // pred_fallthru
          _
        // Predicated region
        $region17: #{tpu_custom_call.1} parent=11 // pred_check
          %p291 = pneg %p111
        $region18: #{tpu_custom_call.1} parent=11 // pred_check_branch
          %293 = sbr.rel (%p291) target = $region20
        $region19: #{tpu_custom_call.1} parent=11 // pred_region
          _
        $region20: #{tpu_custom_call.1} parent=11 // pred_fallthru
          _
        // Predicated region
        $region21: #{tpu_custom_call.1} parent=11 // pred_check
          %p294 = pneg %p132
        $region22: #{tpu_custom_call.1} parent=11 // pred_check_branch
          %296 = sbr.rel (%p294) target = $region24
        $region23: #{tpu_custom_call.1} parent=11 // pred_region
          _
        $region24: #{tpu_custom_call.1} parent=11 // pred_fallthru
          _
        // Predicated region
        $region25: #{tpu_custom_call.1} parent=11 // pred_check
          %p297 = pneg %p153
        $region26: #{tpu_custom_call.1} parent=11 // pred_check_branch
          %299 = sbr.rel (%p297) target = $region28
        $region27: #{tpu_custom_call.1} parent=11 // pred_region
          _
        $region28: #{tpu_custom_call.1} parent=11 // pred_fallthru
          _
        // Predicated region
        $region29: #{tpu_custom_call.1} parent=11 // pred_check
          %p300 = pneg %p174
        $region30: #{tpu_custom_call.1} parent=11 // pred_check_branch
          %302 = sbr.rel (%p300) target = $region32
        $region31: #{tpu_custom_call.1} parent=11 // pred_region
          _
        $region32: #{tpu_custom_call.1} parent=11 // pred_fallthru
          _
        // Predicated region
        $region33: #{tpu_custom_call.1} parent=11 // pred_check
          %p303 = pneg %p195
        $region34: #{tpu_custom_call.1} parent=11 // pred_check_branch
          %305 = sbr.rel (%p303) target = $region36
        $region35: #{tpu_custom_call.1} parent=11 // pred_region
          _
        $region36: #{tpu_custom_call.1} parent=11 // pred_fallthru
          _
      $region12: #{tpu_custom_call.1} parent=5 // pred_fallthru
        _
      %p306 = scmp.lt.s32.totalorder %s17, 2
      // Predicated region
      $region37: #{tpu_custom_call.1} parent=5 // pred_check
        %p307 = pneg %p306
      $region38: #{tpu_custom_call.1} parent=5 // pred_check_branch
        %309 = sbr.rel (%p307) target = $region40
      $region39: #{tpu_custom_call.1} parent=5 // pred_region
        // Predicated region
        $region41: #{tpu_custom_call.1} parent=39 // pred_check
          %p310 = pneg %p37
        $region42: #{tpu_custom_call.1} parent=39 // pred_check_branch
          %312 = sbr.rel (%p310) target = $region44
        $region43: #{tpu_custom_call.1} parent=39 // pred_region
          %s313 = smul.u32 13, %s17
          %s314 = ssub.s32 25, %s313
          %p315 = scmp.lt.s32.totalorder %s314, 13
          %s316 = scalar_select %p315, %s314, 13
          %s317 = smul.u32 128, %s316
          %p318 = scmp.lt.s32.totalorder %s313, 24
          %s319 = scalar_select %p318, %s313, 24
          %s320 = smul.addr %s319, 8
          %s321 = scalar_lea.vmem %s0, %s320
          %s322 = smul.u32 13, %s17
          %s323 = ssub.s32 25, %s322
          %p324 = scmp.lt.s32.totalorder %s323, 13
          %s325 = scalar_select %p324, %s323, 13
          %s326 = smul.u32 128, %s325
        $region44: #{tpu_custom_call.1} parent=39 // pred_fallthru
          _
        // Predicated region
        $region45: #{tpu_custom_call.1} parent=39 // pred_check
          %p327 = pneg %p63
        $region46: #{tpu_custom_call.1} parent=39 // pred_check_branch
          %329 = sbr.rel (%p327) target = $region48
        $region47: #{tpu_custom_call.1} parent=39 // pred_region
          %s330 = smul.u32 13, %s17
          %s331 = ssub.s32 25, %s330
          %p332 = scmp.lt.s32.totalorder %s331, 13
          %s333 = scalar_select %p332, %s331, 13
          %s334 = smul.u32 128, %s333
          %p335 = scmp.lt.s32.totalorder %s330, 24
          %s336 = scalar_select %p335, %s330, 24
          %s337 = smul.addr %s336, 8
          %s338 = scalar_lea.vmem %s1, %s337
          %s339 = smul.u32 13, %s17
          %s340 = ssub.s32 25, %s339
          %p341 = scmp.lt.s32.totalorder %s340, 13
          %s342 = scalar_select %p341, %s340, 13
          %s343 = smul.u32 128, %s342
        $region48: #{tpu_custom_call.1} parent=39 // pred_fallthru
          _
      $region40: #{tpu_custom_call.1} parent=5 // pred_fallthru
        _
      %p344 = scmp.le.s32.totalorder 1, %s17
      %p345 = scmp.lt.s32.totalorder %s17, 3
      %p346 = pnand %p344, %p345
      %p347 = pneg %p346
      // Predicated region
      $region49: #{tpu_custom_call.1} parent=5 // pred_check
        _
      $region50: #{tpu_custom_call.1} parent=5 // pred_check_branch
        %349 = sbr.rel (%p346) target = $region52
      $region51: #{tpu_custom_call.1} parent=5 // pred_region
        %s350 = ssub.s32 %s17, 1
        %s351 = smul.u32 13, %s22
        %s352 = ssub.s32 25, %s351
        %p353 = scmp.lt.s32.totalorder %s352, 13
        %s354 = scalar_select %p353, %s352, 13
        %s355 = smul.u32 128, %s354
        %p356 = scmp.lt.s32.totalorder %s351, 24
        %s357 = scalar_select %p356, %s351, 24
        %s358 = smul.addr %s357, 8
        %s359 = scalar_lea.vmem %s0, %s358
        %p360 = pneg %p43
        %p361 = pneg %p40
        %s362 = smul.u32 13, %s22
        %s363 = ssub.s32 25, %s362
        %p364 = scmp.lt.s32.totalorder %s363, 13
        %s365 = scalar_select %p364, %s363, 13
        %s366 = smul.u32 128, %s365
        %p367 = scmp.lt.s32.totalorder %s362, 24
        %s368 = scalar_select %p367, %s362, 24
        %s369 = smul.addr %s368, 8
        %s370 = scalar_lea.vmem %s1, %s369
        %p371 = pneg %p69
        %p372 = pneg %p66
        %p373 = pneg %p90
        %p374 = pneg %p87
        %p375 = pneg %p111
        %p376 = pneg %p108
        %p377 = pneg %p132
        %p378 = pneg %p129
        %p379 = pneg %p153
        %p380 = pneg %p150
        %p381 = pneg %p174
        %p382 = pneg %p171
        %p383 = pneg %p195
        %p384 = pneg %p192
        %p385 = pneg %p221
        %p386 = pneg %p218
        %s387 = sand.u32 %s208, 1
        %s388 = sand.u32 %s208, 1
        %s389 = smul.addr %s388, 104
        %s390 = scalar_lea.vmem [#allocation2], %s389
        %p391 = pneg %p247
        %p392 = pneg %p244
        %s393 = sand.u32 %s234, 1
        %s394 = sand.u32 %s234, 1
        %s395 = smul.addr %s394, 104
        %s396 = scalar_lea.vmem [#allocation3], %s395
        %p397 = pneg %p273
        %p398 = pneg %p270
        %s399 = sand.u32 %s260, 1
        %s400 = sand.u32 %s260, 1
        %s401 = smul.addr %s400, 104
        %s402 = scalar_lea.vmem [#allocation4], %s401
        %s403 = smul.u32 13, %s22
        %s404 = ssub.s32 25, %s403
        %p405 = scmp.lt.s32.totalorder %s404, 13
        %s406 = scalar_select %p405, %s404, 13
        %s407 = smul.u32 128, %s406
        %p408 = scmp.lt.s32.totalorder %s403, 24
        %s409 = scalar_select %p408, %s403, 24
        %s410 = smul.addr %s409, 8
        %s411 = scalar_lea.vmem %s0, %s410
        %s412 = smul.u32 13, %s22
        %s413 = ssub.s32 25, %s412
        %p414 = scmp.lt.s32.totalorder %s413, 13
        %s415 = scalar_select %p414, %s413, 13
        %s416 = smul.u32 128, %s415
        %s417 = smul.u32 13, %s22
        %s418 = ssub.s32 25, %s417
        %p419 = scmp.lt.s32.totalorder %s418, 13
        %s420 = scalar_select %p419, %s418, 13
        %s421 = smul.u32 128, %s420
        %p422 = scmp.lt.s32.totalorder %s417, 24
        %s423 = scalar_select %p422, %s417, 24
        %s424 = smul.addr %s423, 8
        %s425 = scalar_lea.vmem %s1, %s424
        %s426 = smul.u32 13, %s22
        %s427 = ssub.s32 25, %s426
        %p428 = scmp.lt.s32.totalorder %s427, 13
        %s429 = scalar_select %p428, %s427, 13
        %s430 = smul.u32 128, %s429
        %s431 = smul.u32 13, %s22
        %s432 = ssub.s32 25, %s431
        %p433 = scmp.lt.s32.totalorder %s432, 13
        %s434 = scalar_select %p433, %s432, 13
        %s435 = smul.u32 128, %s434
        %s436 = smul.u32 13, %s22
        %s437 = ssub.s32 25, %s436
        %p438 = scmp.lt.s32.totalorder %s437, 13
        %s439 = scalar_select %p438, %s437, 13
        %s440 = smul.u32 128, %s439
        %s441 = smul.u32 13, %s22
        %s442 = ssub.s32 25, %s441
        %p443 = scmp.lt.s32.totalorder %s442, 13
        %s444 = scalar_select %p443, %s442, 13
        %s445 = smul.u32 128, %s444
        %v446 = vld [vmem:[%s411] sm:$0xff]
        %v447 = vld [vmem:[%s411 + $0x8] sm:$0xff]
        %v448 = vld [vmem:[%s411 + $0x10] sm:$0xff]
        %v449 = vld [vmem:[%s411 + $0x18] sm:$0xff]
        %v450 = vld [vmem:[%s411 + $0x20] sm:$0xff]
        %v451 = vld [vmem:[%s411 + $0x28] sm:$0xff]
        %v452 = vld [vmem:[%s411 + $0x30] sm:$0xff]
        %v453 = vld [vmem:[%s411 + $0x38] sm:$0xff]
        %v454 = vld [vmem:[%s411 + $0x40] sm:$0xff]
        %v455 = vld [vmem:[%s411 + $0x48] sm:$0xff]
        %v456 = vld [vmem:[%s411 + $0x50] sm:$0xff]
        %v457 = vld [vmem:[%s411 + $0x58] sm:$0xff]
        %v458 = vld [vmem:[%s411 + $0x60] sm:$0xff]
        %v459 = vld [vmem:[%s2] sm:$0xff]
        %v460 = vld [vmem:[%s2 + $0x8] sm:$0xff]
        %v461 = vld [vmem:[%s2 + $0x10] sm:$0xff]
        %v462 = vld [vmem:[%s2 + $0x18] sm:$0xff]
        %v463 = vld [vmem:[%s2 + $0x20] sm:$0xff]
        %v464 = vld [vmem:[%s2 + $0x28] sm:$0xff]
        %v465 = vld [vmem:[%s3] sm:$0x1]
        %v467 = vlaneseq
        %v468 = vshrl.u32 %v467, 7
        %v469 = vsub.s32 0, %v468
        %v470 = vrot.slane %v465, %v469
        %vm472 = vcmask 392192
        %v474 = vsel %vm472, %v446, 0
        %v477 = vsel %vm472, %v447, 0
        %v480 = vsel %vm472, %v448, 0
        %v483 = vsel %vm472, %v449, 0
        %v486 = vsel %vm472, %v450, 0
        %v489 = vsel %vm472, %v451, 0
        %v492 = vsel %vm472, %v452, 0
        %v495 = vsel %vm472, %v453, 0
        %v498 = vsel %vm472, %v454, 0
        %v501 = vsel %vm472, %v455, 0
        %v504 = vsel %vm472, %v456, 0
        %v507 = vsel %vm472, %v457, 0
        %v510 = vsel %vm472, %v458, 0
        %512 = vmatprep.subr.mxu0 0.0
        %513 = vmatpush1.msra.mxu0 %v459
        %514 = vmatprep.subr.mxu0 0.0
        %515 = vmatpush1.msra.mxu0 %v460
        %516 = vmatprep.subr.mxu0 0.0
        %517 = vmatpush1.msra.mxu0 %v461
        %518 = vmatprep.subr.mxu0 0.0
        %519 = vmatpush1.msra.mxu0 %v462
        %520 = vmatprep.subr.mxu0 0.0
        %521 = vmatpush1.msra.mxu0 %v463
        %522 = vmatprep.subr.mxu0 0.0
        %523 = vmatpush1.msra.mxu0 %v464
        %524 = vmatprep.subr.mxu0 0.0
        %525 = vmatpush1.msra.mxu0 0.0
        %526 = vmatprep.subr.mxu0 0.0
        %527 = vmatpush1.msra.mxu0 0.0
        %528 = vmatprep.subr.mxu0 0.0
        %529 = vmatpush1.msra.mxu0 0.0
        %530 = vmatprep.subr.mxu0 0.0
        %531 = vmatpush1.msra.mxu0 0.0
        %532 = vmatprep.subr.mxu0 0.0
        %533 = vmatpush1.msra.mxu0 0.0
        %534 = vmatprep.subr.mxu0 0.0
        %535 = vmatpush1.msra.mxu0 0.0
        %536 = vmatprep.subr.mxu0 0.0
        %537 = vmatpush1.msra.mxu0 0.0
        %538 = vmatprep.subr.mxu0 0.0
        %539 = vmatpush1.msra.mxu0 0.0
        %540 = vmatprep.subr.mxu0 0.0
        %541 = vmatpush1.msra.mxu0 0.0
        %542 = vmatprep.subr.mxu0 0.0
        %543 = vmatpush1.msra.mxu0 0.0
        %544 = vmatprep.subr.mxu0 0.0
        %545 = vmatpush1.msra.mxu0 0.0
        %546 = vmatprep.subr.mxu0 0.0
        %547 = vmatpush1.msra.mxu0 0.0
        %548 = vmatprep.subr.mxu0 0.0
        %549 = vmatpush1.msra.mxu0 0.0
        %550 = vmatprep.subr.mxu0 0.0
        %551 = vmatpush1.msra.mxu0 0.0
        %552 = vmatprep.subr.mxu0 0.0
        %553 = vmatpush1.msra.mxu0 0.0
        %554 = vmatprep.subr.mxu0 0.0
        %555 = vmatpush1.msra.mxu0 0.0
        %556 = vmatprep.subr.mxu0 0.0
        %557 = vmatpush1.msra.mxu0 0.0
        %558 = vmatprep.subr.mxu0 0.0
        %559 = vmatpush1.msra.mxu0 0.0
        %560 = vmatprep.subr.mxu0 0.0
        %561 = vmatpush1.msra.mxu0 0.0
        %562 = vmatprep.subr.mxu0 0.0
        %563 = vmatpush1.msra.mxu0 0.0
        %564 = vmatprep.subr.mxu0 0.0
        %565 = vmatpush1.msra.mxu0 0.0
        %566 = vmatprep.subr.mxu0 0.0
        %567 = vmatpush1.msra.mxu0 0.0
        %568 = vmatprep.subr.mxu0 0.0
        %569 = vmatpush1.msra.mxu0 0.0
        %570 = vmatprep.subr.mxu0 0.0
        %571 = vmatpush1.msra.mxu0 0.0
        %572 = vmatprep.subr.mxu0 0.0
        %573 = vmatpush1.msra.mxu0 0.0
        %574 = vmatprep.subr.mxu0 0.0
        %575 = vmatpush1.msra.mxu0 0.0
        %576 = vmatprep.mubr.f32.mxu0 0.0
        %577 = vmatmul.mubr.f32.gmra.mrb[0].mxu0 %v474
        %v578 = vpop.f32.mrb[0].mxu0
        %v579 = vadd.f32 %v470, %v578
        %v580 = vpop.f32.mrb[0].mxu0
        %581 = vmatprep.mubr.f32.mxu0 0.0
        %582 = vmatmul.mubr.f32.gmra.mrb[0].mxu0 %v477
        %v583 = vpop.f32.mrb[0].mxu0
        %v584 = vadd.f32 %v470, %v583
        %v585 = vpop.f32.mrb[0].mxu0
        %586 = vmatprep.mubr.f32.mxu0 0.0
        %587 = vmatmul.mubr.f32.gmra.mrb[0].mxu0 %v480
        %v588 = vpop.f32.mrb[0].mxu0
        %v589 = vadd.f32 %v470, %v588
        %v590 = vpop.f32.mrb[0].mxu0
        %591 = vmatprep.mubr.f32.mxu0 0.0
        %592 = vmatmul.mubr.f32.gmra.mrb[0].mxu0 %v483
        %v593 = vpop.f32.mrb[0].mxu0
        %v594 = vadd.f32 %v470, %v593
        %v595 = vpop.f32.mrb[0].mxu0
        %596 = vmatprep.mubr.f32.mxu0 0.0
        %597 = vmatmul.mubr.f32.gmra.mrb[0].mxu0 %v486
        %v598 = vpop.f32.mrb[0].mxu0
        %v599 = vadd.f32 %v470, %v598
        %v600 = vpop.f32.mrb[0].mxu0
        %601 = vmatprep.mubr.f32.mxu0 0.0
        %602 = vmatmul.mubr.f32.gmra.mrb[0].mxu0 %v489
        %v603 = vpop.f32.mrb[0].mxu0
        %v604 = vadd.f32 %v470, %v603
        %v605 = vpop.f32.mrb[0].mxu0
        %606 = vmatprep.mubr.f32.mxu0 0.0
        %607 = vmatmul.mubr.f32.gmra.mrb[0].mxu0 %v492
        %v608 = vpop.f32.mrb[0].mxu0
        %v609 = vadd.f32 %v470, %v608
        %v610 = vpop.f32.mrb[0].mxu0
        %611 = vmatprep.mubr.f32.mxu0 0.0
        %612 = vmatmul.mubr.f32.gmra.mrb[0].mxu0 %v495
        %v613 = vpop.f32.mrb[0].mxu0
        %v614 = vadd.f32 %v470, %v613
        %v615 = vpop.f32.mrb[0].mxu0
        %616 = vmatprep.mubr.f32.mxu0 0.0
        %617 = vmatmul.mubr.f32.gmra.mrb[0].mxu0 %v498
        %v618 = vpop.f32.mrb[0].mxu0
        %v619 = vadd.f32 %v470, %v618
        %v620 = vpop.f32.mrb[0].mxu0
        %621 = vmatprep.mubr.f32.mxu0 0.0
        %622 = vmatmul.mubr.f32.gmra.mrb[0].mxu0 %v501
        %v623 = vpop.f32.mrb[0].mxu0
        %v624 = vadd.f32 %v470, %v623
        %v625 = vpop.f32.mrb[0].mxu0
        %626 = vmatprep.mubr.f32.mxu0 0.0
        %627 = vmatmul.mubr.f32.gmra.mrb[0].mxu0 %v504
        %v628 = vpop.f32.mrb[0].mxu0
        %v629 = vadd.f32 %v470, %v628
        %v630 = vpop.f32.mrb[0].mxu0
        %631 = vmatprep.mubr.f32.mxu0 0.0
        %632 = vmatmul.mubr.f32.gmra.mrb[0].mxu0 %v507
        %v633 = vpop.f32.mrb[0].mxu0
        %v634 = vadd.f32 %v470, %v633
        %v635 = vpop.f32.mrb[0].mxu0
        %636 = vmatprep.mubr.f32.mxu0 0.0
        %637 = vmatmul.mubr.f32.gmra.mrb[0].mxu0 %v510
        %v638 = vpop.f32.mrb[0].mxu0
        %v639 = vadd.f32 %v470, %v638
        %v640 = vpop.f32.mrb[0].mxu0
        %641 = vdwg.mxu0
        %v642 = vmax.f32 %v579, 0.0
        %v643 = vmax.f32 %v584, 0.0
        %v644 = vmax.f32 %v589, 0.0
        %v645 = vmax.f32 %v594, 0.0
        %v646 = vmax.f32 %v599, 0.0
        %v647 = vmax.f32 %v604, 0.0
        %v648 = vmax.f32 %v609, 0.0
        %v649 = vmax.f32 %v614, 0.0
        %v650 = vmax.f32 %v619, 0.0
        %v651 = vmax.f32 %v624, 0.0
        %v652 = vmax.f32 %v629, 0.0
        %v653 = vmax.f32 %v634, 0.0
        %v654 = vmax.f32 %v639, 0.0
        %v655 = vld [vmem:[%s4] sm:$0xff]
        %v656 = vld [vmem:[%s4 + $0x8] sm:$0xff]
        %v657 = vld [vmem:[%s4 + $0x10] sm:$0xff]
        %v658 = vld [vmem:[%s4 + $0x18] sm:$0xff]
        %v659 = vld [vmem:[%s4 + $0x20] sm:$0xff]
        %v660 = vld [vmem:[%s4 + $0x28] sm:$0xff]
        %v661 = vld [vmem:[%s4 + $0x30] sm:$0xff]
        %v662 = vld [vmem:[%s4 + $0x38] sm:$0xff]
        %v663 = vld [vmem:[%s5] sm:$0x1]
        %v665 = vlaneseq
        %v666 = vshrl.u32 %v665, 7
        %v667 = vsub.s32 0, %v666
        %v668 = vrot.slane %v663, %v667
        %vm670 = vcmask 523264
        %v672 = vsel %vm670, %v642, 0
        %v675 = vsel %vm670, %v643, 0
        %v678 = vsel %vm670, %v644, 0
        %v681 = vsel %vm670, %v645, 0
        %v684 = vsel %vm670, %v646, 0
        %v687 = vsel %vm670, %v647, 0
        %v690 = vsel %vm670, %v648, 0
        %v693 = vsel %vm670, %v649, 0
        %v696 = vsel %vm670, %v650, 0
        %v699 = vsel %vm670, %v651, 0
        %v702 = vsel %vm670, %v652, 0
        %v705 = vsel %vm670, %v653, 0
        %v708 = vsel %vm670, %v654, 0
        %710 = vmatprep.subr.mxu0 0.0
        %711 = vmatpush1.msra.mxu0 %v655
        %712 = vmatprep.subr.mxu0 0.0
        %713 = vmatpush1.msra.mxu0 %v656
        %714 = vmatprep.subr.mxu0 0.0
        %715 = vmatpush1.msra.mxu0 %v657
        %716 = vmatprep.subr.mxu0 0.0
        %717 = vmatpush1.msra.mxu0 %v658
        %718 = vmatprep.subr.mxu0 0.0
        %719 = vmatpush1.msra.mxu0 %v659
        %720 = vmatprep.subr.mxu0 0.0
        %721 = vmatpush1.msra.mxu0 %v660
        %722 = vmatprep.subr.mxu0 0.0
        %723 = vmatpush1.msra.mxu0 %v661
        %724 = vmatprep.subr.mxu0 0.0
        %725 = vmatpush1.msra.mxu0 %v662
        %726 = vmatprep.subr.mxu0 0.0
        %727 = vmatpush1.msra.mxu0 0.0
        %728 = vmatprep.subr.mxu0 0.0
        %729 = vmatpush1.msra.mxu0 0.0
        %730 = vmatprep.subr.mxu0 0.0
        %731 = vmatpush1.msra.mxu0 0.0
        %732 = vmatprep.subr.mxu0 0.0
        %733 = vmatpush1.msra.mxu0 0.0
        %734 = vmatprep.subr.mxu0 0.0
        %735 = vmatpush1.msra.mxu0 0.0
        %736 = vmatprep.subr.mxu0 0.0
        %737 = vmatpush1.msra.mxu0 0.0
        %738 = vmatprep.subr.mxu0 0.0
        %739 = vmatpush1.msra.mxu0 0.0
        %740 = vmatprep.subr.mxu0 0.0
        %741 = vmatpush1.msra.mxu0 0.0
        %742 = vmatprep.subr.mxu0 0.0
        %743 = vmatpush1.msra.mxu0 0.0
        %744 = vmatprep.subr.mxu0 0.0
        %745 = vmatpush1.msra.mxu0 0.0
        %746 = vmatprep.subr.mxu0 0.0
        %747 = vmatpush1.msra.mxu0 0.0
        %748 = vmatprep.subr.mxu0 0.0
        %749 = vmatpush1.msra.mxu0 0.0
        %750 = vmatprep.subr.mxu0 0.0
        %751 = vmatpush1.msra.mxu0 0.0
        %752 = vmatprep.subr.mxu0 0.0
        %753 = vmatpush1.msra.mxu0 0.0
        %754 = vmatprep.subr.mxu0 0.0
        %755 = vmatpush1.msra.mxu0 0.0
        %756 = vmatprep.subr.mxu0 0.0
        %757 = vmatpush1.msra.mxu0 0.0
        %758 = vmatprep.subr.mxu0 0.0
        %759 = vmatpush1.msra.mxu0 0.0
        %760 = vmatprep.subr.mxu0 0.0
        %761 = vmatpush1.msra.mxu0 0.0
        %762 = vmatprep.subr.mxu0 0.0
        %763 = vmatpush1.msra.mxu0 0.0
        %764 = vmatprep.subr.mxu0 0.0
        %765 = vmatpush1.msra.mxu0 0.0
        %766 = vmatprep.subr.mxu0 0.0
        %767 = vmatpush1.msra.mxu0 0.0
        %768 = vmatprep.subr.mxu0 0.0
        %769 = vmatpush1.msra.mxu0 0.0
        %770 = vmatprep.subr.mxu0 0.0
        %771 = vmatpush1.msra.mxu0 0.0
        %772 = vmatprep.subr.mxu0 0.0
        %773 = vmatpush1.msra.mxu0 0.0
        %774 = vmatprep.mubr.f32.mxu0 0.0
        %775 = vmatmul.mubr.f32.gmra.mrb[0].mxu0 %v672
        %v776 = vpop.f32.mrb[0].mxu0
        %v777 = vadd.f32 %v668, %v776
        %v778 = vpop.f32.mrb[0].mxu0
        %779 = vmatprep.mubr.f32.mxu0 0.0
        %780 = vmatmul.mubr.f32.gmra.mrb[0].mxu0 %v675
        %v781 = vpop.f32.mrb[0].mxu0
        %v782 = vadd.f32 %v668, %v781
        %v783 = vpop.f32.mrb[0].mxu0
        %784 = vmatprep.mubr.f32.mxu0 0.0
        %785 = vmatmul.mubr.f32.gmra.mrb[0].mxu0 %v678
        %v786 = vpop.f32.mrb[0].mxu0
        %v787 = vadd.f32 %v668, %v786
        %v788 = vpop.f32.mrb[0].mxu0
        %789 = vmatprep.mubr.f32.mxu0 0.0
        %790 = vmatmul.mubr.f32.gmra.mrb[0].mxu0 %v681
        %v791 = vpop.f32.mrb[0].mxu0
        %v792 = vadd.f32 %v668, %v791
        %v793 = vpop.f32.mrb[0].mxu0
        %794 = vmatprep.mubr.f32.mxu0 0.0
        %795 = vmatmul.mubr.f32.gmra.mrb[0].mxu0 %v684
        %v796 = vpop.f32.mrb[0].mxu0
        %v797 = vadd.f32 %v668, %v796
        %v798 = vpop.f32.mrb[0].mxu0
        %799 = vmatprep.mubr.f32.mxu0 0.0
        %800 = vmatmul.mubr.f32.gmra.mrb[0].mxu0 %v687
        %v801 = vpop.f32.mrb[0].mxu0
        %v802 = vadd.f32 %v668, %v801
        %v803 = vpop.f32.mrb[0].mxu0
        %804 = vmatprep.mubr.f32.mxu0 0.0
        %805 = vmatmul.mubr.f32.gmra.mrb[0].mxu0 %v690
        %v806 = vpop.f32.mrb[0].mxu0
        %v807 = vadd.f32 %v668, %v806
        %v808 = vpop.f32.mrb[0].mxu0
        %809 = vmatprep.mubr.f32.mxu0 0.0
        %810 = vmatmul.mubr.f32.gmra.mrb[0].mxu0 %v693
        %v811 = vpop.f32.mrb[0].mxu0
        %v812 = vadd.f32 %v668, %v811
        %v813 = vpop.f32.mrb[0].mxu0
        %814 = vmatprep.mubr.f32.mxu0 0.0
        %815 = vmatmul.mubr.f32.gmra.mrb[0].mxu0 %v696
        %v816 = vpop.f32.mrb[0].mxu0
        %v817 = vadd.f32 %v668, %v816
        %v818 = vpop.f32.mrb[0].mxu0
        %819 = vmatprep.mubr.f32.mxu0 0.0
        %820 = vmatmul.mubr.f32.gmra.mrb[0].mxu0 %v699
        %v821 = vpop.f32.mrb[0].mxu0
        %v822 = vadd.f32 %v668, %v821
        %v823 = vpop.f32.mrb[0].mxu0
        %824 = vmatprep.mubr.f32.mxu0 0.0
        %825 = vmatmul.mubr.f32.gmra.mrb[0].mxu0 %v702
        %v826 = vpop.f32.mrb[0].mxu0
        %v827 = vadd.f32 %v668, %v826
        %v828 = vpop.f32.mrb[0].mxu0
        %829 = vmatprep.mubr.f32.mxu0 0.0
        %830 = vmatmul.mubr.f32.gmra.mrb[0].mxu0 %v705
        %v831 = vpop.f32.mrb[0].mxu0
        %v832 = vadd.f32 %v668, %v831
        %v833 = vpop.f32.mrb[0].mxu0
        %834 = vmatprep.mubr.f32.mxu0 0.0
        %835 = vmatmul.mubr.f32.gmra.mrb[0].mxu0 %v708
        %v836 = vpop.f32.mrb[0].mxu0
        %v837 = vadd.f32 %v668, %v836
        %v838 = vpop.f32.mrb[0].mxu0
        %839 = vdwg.mxu0
        %v840 = vmax.f32 %v777, 0.0
        %v841 = vmax.f32 %v782, 0.0
        %v842 = vmax.f32 %v787, 0.0
        %v843 = vmax.f32 %v792, 0.0
        %v844 = vmax.f32 %v797, 0.0
        %v845 = vmax.f32 %v802, 0.0
        %v846 = vmax.f32 %v807, 0.0
        %v847 = vmax.f32 %v812, 0.0
        %v848 = vmax.f32 %v817, 0.0
        %v849 = vmax.f32 %v822, 0.0
        %v850 = vmax.f32 %v827, 0.0
        %v851 = vmax.f32 %v832, 0.0
        %v852 = vmax.f32 %v837, 0.0
        %v853 = vld [vmem:[%s6] sm:$0xff]
        %v854 = vld [vmem:[%s6 + $0x8] sm:$0xff]
        %v855 = vld [vmem:[%s6 + $0x10] sm:$0xff]
        %v856 = vld [vmem:[%s6 + $0x18] sm:$0xff]
        %v857 = vld [vmem:[%s6 + $0x20] sm:$0xff]
        %v858 = vld [vmem:[%s6 + $0x28] sm:$0xff]
        %v859 = vld [vmem:[%s6 + $0x30] sm:$0xff]
        %v860 = vld [vmem:[%s6 + $0x38] sm:$0xff]
        %v861 = vld [vmem:[%s7] sm:$0x1]
        %v863 = vlaneseq
        %v864 = vshrl.u32 %v863, 7
        %v865 = vsub.s32 0, %v864
        %v866 = vrot.slane %v861, %v865
        %v869 = vsel %vm670, %v840, 0
        %v872 = vsel %vm670, %v841, 0
        %v875 = vsel %vm670, %v842, 0
        %v878 = vsel %vm670, %v843, 0
        %v881 = vsel %vm670, %v844, 0
        %v884 = vsel %vm670, %v845, 0
        %v887 = vsel %vm670, %v846, 0
        %v890 = vsel %vm670, %v847, 0
        %v893 = vsel %vm670, %v848, 0
        %v896 = vsel %vm670, %v849, 0
        %v899 = vsel %vm670, %v850, 0
        %v902 = vsel %vm670, %v851, 0
        %v905 = vsel %vm670, %v852, 0
        %907 = vmatprep.subr.mxu0 0.0
        %908 = vmatpush1.msra.mxu0 %v853
        %909 = vmatprep.subr.mxu0 0.0
        %910 = vmatpush1.msra.mxu0 %v854
        %911 = vmatprep.subr.mxu0 0.0
        %912 = vmatpush1.msra.mxu0 %v855
        %913 = vmatprep.subr.mxu0 0.0
        %914 = vmatpush1.msra.mxu0 %v856
        %915 = vmatprep.subr.mxu0 0.0
        %916 = vmatpush1.msra.mxu0 %v857
        %917 = vmatprep.subr.mxu0 0.0
        %918 = vmatpush1.msra.mxu0 %v858
        %919 = vmatprep.subr.mxu0 0.0
        %920 = vmatpush1.msra.mxu0 %v859
        %921 = vmatprep.subr.mxu0 0.0
        %922 = vmatpush1.msra.mxu0 %v860
        %923 = vmatprep.subr.mxu0 0.0
        %924 = vmatpush1.msra.mxu0 0.0
        %925 = vmatprep.subr.mxu0 0.0
        %926 = vmatpush1.msra.mxu0 0.0
        %927 = vmatprep.subr.mxu0 0.0
        %928 = vmatpush1.msra.mxu0 0.0
        %929 = vmatprep.subr.mxu0 0.0
        %930 = vmatpush1.msra.mxu0 0.0
        %931 = vmatprep.subr.mxu0 0.0
        %932 = vmatpush1.msra.mxu0 0.0
        %933 = vmatprep.subr.mxu0 0.0
        %934 = vmatpush1.msra.mxu0 0.0
        %935 = vmatprep.subr.mxu0 0.0
        %936 = vmatpush1.msra.mxu0 0.0
        %937 = vmatprep.subr.mxu0 0.0
        %938 = vmatpush1.msra.mxu0 0.0
        %939 = vmatprep.subr.mxu0 0.0
        %940 = vmatpush1.msra.mxu0 0.0
        %941 = vmatprep.subr.mxu0 0.0
        %942 = vmatpush1.msra.mxu0 0.0
        %943 = vmatprep.subr.mxu0 0.0
        %944 = vmatpush1.msra.mxu0 0.0
        %945 = vmatprep.subr.mxu0 0.0
        %946 = vmatpush1.msra.mxu0 0.0
        %947 = vmatprep.subr.mxu0 0.0
        %948 = vmatpush1.msra.mxu0 0.0
        %949 = vmatprep.subr.mxu0 0.0
        %950 = vmatpush1.msra.mxu0 0.0
        %951 = vmatprep.subr.mxu0 0.0
        %952 = vmatpush1.msra.mxu0 0.0
        %953 = vmatprep.subr.mxu0 0.0
        %954 = vmatpush1.msra.mxu0 0.0
        %955 = vmatprep.subr.mxu0 0.0
        %956 = vmatpush1.msra.mxu0 0.0
        %957 = vmatprep.subr.mxu0 0.0
        %958 = vmatpush1.msra.mxu0 0.0
        %959 = vmatprep.subr.mxu0 0.0
        %960 = vmatpush1.msra.mxu0 0.0
        %961 = vmatprep.subr.mxu0 0.0
        %962 = vmatpush1.msra.mxu0 0.0
        %963 = vmatprep.subr.mxu0 0.0
        %964 = vmatpush1.msra.mxu0 0.0
        %965 = vmatprep.subr.mxu0 0.0
        %966 = vmatpush1.msra.mxu0 0.0
        %967 = vmatprep.subr.mxu0 0.0
        %968 = vmatpush1.msra.mxu0 0.0
        %969 = vmatprep.subr.mxu0 0.0
        %970 = vmatpush1.msra.mxu0 0.0
        %971 = vmatprep.mubr.f32.mxu0 0.0
        %972 = vmatmul.mubr.f32.gmra.mrb[0].mxu0 %v869
        %v973 = vpop.f32.mrb[0].mxu0
        %v974 = vadd.f32 %v866, %v973
        %v975 = vpop.f32.mrb[0].mxu0
        %976 = vmatprep.mubr.f32.mxu0 0.0
        %977 = vmatmul.mubr.f32.gmra.mrb[0].mxu0 %v872
        %v978 = vpop.f32.mrb[0].mxu0
        %v979 = vadd.f32 %v866, %v978
        %v980 = vpop.f32.mrb[0].mxu0
        %981 = vmatprep.mubr.f32.mxu0 0.0
        %982 = vmatmul.mubr.f32.gmra.mrb[0].mxu0 %v875
        %v983 = vpop.f32.mrb[0].mxu0
        %v984 = vadd.f32 %v866, %v983
        %v985 = vpop.f32.mrb[0].mxu0
        %986 = vmatprep.mubr.f32.mxu0 0.0
        %987 = vmatmul.mubr.f32.gmra.mrb[0].mxu0 %v878
        %v988 = vpop.f32.mrb[0].mxu0
        %v989 = vadd.f32 %v866, %v988
        %v990 = vpop.f32.mrb[0].mxu0
        %991 = vmatprep.mubr.f32.mxu0 0.0
        %992 = vmatmul.mubr.f32.gmra.mrb[0].mxu0 %v881
        %v993 = vpop.f32.mrb[0].mxu0
        %v994 = vadd.f32 %v866, %v993
        %v995 = vpop.f32.mrb[0].mxu0
        %996 = vmatprep.mubr.f32.mxu0 0.0
        %997 = vmatmul.mubr.f32.gmra.mrb[0].mxu0 %v884
        %v998 = vpop.f32.mrb[0].mxu0
        %v999 = vadd.f32 %v866, %v998
        %v1000 = vpop.f32.mrb[0].mxu0
        %1001 = vmatprep.mubr.f32.mxu0 0.0
        %1002 = vmatmul.mubr.f32.gmra.mrb[0].mxu0 %v887
        %v1003 = vpop.f32.mrb[0].mxu0
        %v1004 = vadd.f32 %v866, %v1003
        %v1005 = vpop.f32.mrb[0].mxu0
        %1006 = vmatprep.mubr.f32.mxu0 0.0
        %1007 = vmatmul.mubr.f32.gmra.mrb[0].mxu0 %v890
        %v1008 = vpop.f32.mrb[0].mxu0
        %v1009 = vadd.f32 %v866, %v1008
        %v1010 = vpop.f32.mrb[0].mxu0
        %1011 = vmatprep.mubr.f32.mxu0 0.0
        %1012 = vmatmul.mubr.f32.gmra.mrb[0].mxu0 %v893
        %v1013 = vpop.f32.mrb[0].mxu0
        %v1014 = vadd.f32 %v866, %v1013
        %v1015 = vpop.f32.mrb[0].mxu0
        %1016 = vmatprep.mubr.f32.mxu0 0.0
        %1017 = vmatmul.mubr.f32.gmra.mrb[0].mxu0 %v896
        %v1018 = vpop.f32.mrb[0].mxu0
        %v1019 = vadd.f32 %v866, %v1018
        %v1020 = vpop.f32.mrb[0].mxu0
        %1021 = vmatprep.mubr.f32.mxu0 0.0
        %1022 = vmatmul.mubr.f32.gmra.mrb[0].mxu0 %v899
        %v1023 = vpop.f32.mrb[0].mxu0
        %v1024 = vadd.f32 %v866, %v1023
        %v1025 = vpop.f32.mrb[0].mxu0
        %1026 = vmatprep.mubr.f32.mxu0 0.0
        %1027 = vmatmul.mubr.f32.gmra.mrb[0].mxu0 %v902
        %v1028 = vpop.f32.mrb[0].mxu0
        %v1029 = vadd.f32 %v866, %v1028
        %v1030 = vpop.f32.mrb[0].mxu0
        %1031 = vmatprep.mubr.f32.mxu0 0.0
        %1032 = vmatmul.mubr.f32.gmra.mrb[0].mxu0 %v905
        %v1033 = vpop.f32.mrb[0].mxu0
        %v1034 = vadd.f32 %v866, %v1033
        %v1035 = vpop.f32.mrb[0].mxu0
        %1036 = vdwg.mxu0
        %v1037 = vmax.f32 %v974, -20.0
        %v1038 = vmax.f32 %v979, -20.0
        %v1039 = vmax.f32 %v984, -20.0
        %v1040 = vmax.f32 %v989, -20.0
        %v1041 = vmax.f32 %v994, -20.0
        %v1042 = vmax.f32 %v999, -20.0
        %v1043 = vmax.f32 %v1004, -20.0
        %v1044 = vmax.f32 %v1009, -20.0
        %v1045 = vmax.f32 %v1014, -20.0
        %v1046 = vmax.f32 %v1019, -20.0
        %v1047 = vmax.f32 %v1024, -20.0
        %v1048 = vmax.f32 %v1029, -20.0
        %v1049 = vmax.f32 %v1034, -20.0
        %v1050 = vmin.f32 %v1037, 2.0
        %v1051 = vmin.f32 %v1038, 2.0
        %v1052 = vmin.f32 %v1039, 2.0
        %v1053 = vmin.f32 %v1040, 2.0
        %v1054 = vmin.f32 %v1041, 2.0
        %v1055 = vmin.f32 %v1042, 2.0
        %v1056 = vmin.f32 %v1043, 2.0
        %v1057 = vmin.f32 %v1044, 2.0
        %v1058 = vmin.f32 %v1045, 2.0
        %v1059 = vmin.f32 %v1046, 2.0
        %v1060 = vmin.f32 %v1047, 2.0
        %v1061 = vmin.f32 %v1048, 2.0
        %v1062 = vmin.f32 %v1049, 2.0
        %v1063 = vmul.f32 %v1050, 1.442695
        %v1064 = vpow.pop %v1063
        %v1065 = vmul.f32 %v1051, 1.442695
        %v1066 = vpow.pop %v1065
        %v1067 = vmul.f32 %v1052, 1.442695
        %v1068 = vpow.pop %v1067
        %v1069 = vmul.f32 %v1053, 1.442695
        %v1070 = vpow.pop %v1069
        %v1071 = vmul.f32 %v1054, 1.442695
        %v1072 = vpow.pop %v1071
        %v1073 = vmul.f32 %v1055, 1.442695
        %v1074 = vpow.pop %v1073
        %v1075 = vmul.f32 %v1056, 1.442695
        %v1076 = vpow.pop %v1075
        %v1077 = vmul.f32 %v1057, 1.442695
        %v1078 = vpow.pop %v1077
        %v1079 = vmul.f32 %v1058, 1.442695
        %v1080 = vpow.pop %v1079
        %v1081 = vmul.f32 %v1059, 1.442695
        %v1082 = vpow.pop %v1081
        %v1083 = vmul.f32 %v1060, 1.442695
        %v1084 = vpow.pop %v1083
        %v1085 = vmul.f32 %v1061, 1.442695
        %v1086 = vpow.pop %v1085
        %v1087 = vmul.f32 %v1062, 1.442695
        %v1088 = vpow.pop %v1087
        %v1089 = vld [vmem:[%s425] sm:$0xff]
        %v1090 = vld [vmem:[%s425 + $0x8] sm:$0xff]
        %v1091 = vld [vmem:[%s425 + $0x10] sm:$0xff]
        %v1092 = vld [vmem:[%s425 + $0x18] sm:$0xff]
        %v1093 = vld [vmem:[%s425 + $0x20] sm:$0xff]
        %v1094 = vld [vmem:[%s425 + $0x28] sm:$0xff]
        %v1095 = vld [vmem:[%s425 + $0x30] sm:$0xff]
        %v1096 = vld [vmem:[%s425 + $0x38] sm:$0xff]
        %v1097 = vld [vmem:[%s425 + $0x40] sm:$0xff]
        %v1098 = vld [vmem:[%s425 + $0x48] sm:$0xff]
        %v1099 = vld [vmem:[%s425 + $0x50] sm:$0xff]
        %v1100 = vld [vmem:[%s425 + $0x58] sm:$0xff]
        %v1101 = vld [vmem:[%s425 + $0x60] sm:$0xff]
        %1115 = vrot.lane.b32.xlu0 %v1089, 12
        %v1116 = vpop.permute.xlu0 %1115
        %1117 = vrot.lane.b32.xlu0 %v1090, 12
        %v1118 = vpop.permute.xlu0 %1117
        %1119 = vrot.lane.b32.xlu0 %v1091, 12
        %v1120 = vpop.permute.xlu0 %1119
        %1121 = vrot.lane.b32.xlu0 %v1092, 12
        %v1122 = vpop.permute.xlu0 %1121
        %1123 = vrot.lane.b32.xlu0 %v1093, 12
        %v1124 = vpop.permute.xlu0 %1123
        %1125 = vrot.lane.b32.xlu0 %v1094, 12
        %v1126 = vpop.permute.xlu0 %1125
        %1127 = vrot.lane.b32.xlu0 %v1095, 12
        %v1128 = vpop.permute.xlu0 %1127
        %1129 = vrot.lane.b32.xlu0 %v1096, 12
        %v1130 = vpop.permute.xlu0 %1129
        %1131 = vrot.lane.b32.xlu0 %v1097, 12
        %v1132 = vpop.permute.xlu0 %1131
        %1133 = vrot.lane.b32.xlu0 %v1098, 12
        %v1134 = vpop.permute.xlu0 %1133
        %1135 = vrot.lane.b32.xlu0 %v1099, 12
        %v1136 = vpop.permute.xlu0 %1135
        %1137 = vrot.lane.b32.xlu0 %v1100, 12
        %v1138 = vpop.permute.xlu0 %1137
        %1139 = vrot.lane.b32.xlu0 %v1101, 12
        %v1140 = vpop.permute.xlu0 %1139
        %v1154 = vmul.f32 %v1064, %v1116
        %v1155 = vmul.f32 %v1066, %v1118
        %v1156 = vmul.f32 %v1068, %v1120
        %v1157 = vmul.f32 %v1070, %v1122
        %v1158 = vmul.f32 %v1072, %v1124
        %v1159 = vmul.f32 %v1074, %v1126
        %v1160 = vmul.f32 %v1076, %v1128
        %v1161 = vmul.f32 %v1078, %v1130
        %v1162 = vmul.f32 %v1080, %v1132
        %v1163 = vmul.f32 %v1082, %v1134
        %v1164 = vmul.f32 %v1084, %v1136
        %v1165 = vmul.f32 %v1086, %v1138
        %v1166 = vmul.f32 %v1088, %v1140
        %1180 = vrot.lane.b32.xlu0 %v1154, 116
        %v1181 = vpop.permute.xlu0 %1180
        %1182 = vrot.lane.b32.xlu0 %v1155, 116
        %v1183 = vpop.permute.xlu0 %1182
        %1184 = vrot.lane.b32.xlu0 %v1156, 116
        %v1185 = vpop.permute.xlu0 %1184
        %1186 = vrot.lane.b32.xlu0 %v1157, 116
        %v1187 = vpop.permute.xlu0 %1186
        %1188 = vrot.lane.b32.xlu0 %v1158, 116
        %v1189 = vpop.permute.xlu0 %1188
        %1190 = vrot.lane.b32.xlu0 %v1159, 116
        %v1191 = vpop.permute.xlu0 %1190
        %1192 = vrot.lane.b32.xlu0 %v1160, 116
        %v1193 = vpop.permute.xlu0 %1192
        %1194 = vrot.lane.b32.xlu0 %v1161, 116
        %v1195 = vpop.permute.xlu0 %1194
        %1196 = vrot.lane.b32.xlu0 %v1162, 116
        %v1197 = vpop.permute.xlu0 %1196
        %1198 = vrot.lane.b32.xlu0 %v1163, 116
        %v1199 = vpop.permute.xlu0 %1198
        %1200 = vrot.lane.b32.xlu0 %v1164, 116
        %v1201 = vpop.permute.xlu0 %1200
        %1202 = vrot.lane.b32.xlu0 %v1165, 116
        %v1203 = vpop.permute.xlu0 %1202
        %1204 = vrot.lane.b32.xlu0 %v1166, 116
        %v1205 = vpop.permute.xlu0 %1204
        %v1219 = vadd.f32 %v974, %v1181
        %v1220 = vadd.f32 %v979, %v1183
        %v1221 = vadd.f32 %v984, %v1185
        %v1222 = vadd.f32 %v989, %v1187
        %v1223 = vadd.f32 %v994, %v1189
        %v1224 = vadd.f32 %v999, %v1191
        %v1225 = vadd.f32 %v1004, %v1193
        %v1226 = vadd.f32 %v1009, %v1195
        %v1227 = vadd.f32 %v1014, %v1197
        %v1228 = vadd.f32 %v1019, %v1199
        %v1229 = vadd.f32 %v1024, %v1201
        %v1230 = vadd.f32 %v1029, %v1203
        %v1231 = vadd.f32 %v1034, %v1205
        %v1232 = vtanh.pop %v1219
        %v1233 = vtanh.pop %v1220
        %v1234 = vtanh.pop %v1221
        %v1235 = vtanh.pop %v1222
        %v1236 = vtanh.pop %v1223
        %v1237 = vtanh.pop %v1224
        %v1238 = vtanh.pop %v1225
        %v1239 = vtanh.pop %v1226
        %v1240 = vtanh.pop %v1227
        %v1241 = vtanh.pop %v1228
        %v1242 = vtanh.pop %v1229
        %v1243 = vtanh.pop %v1230
        %v1244 = vtanh.pop %v1231
        %v1245 = vmul.f32 %v1089, -0.5
        %v1246 = vmul.f32 %v1090, -0.5
        %v1247 = vmul.f32 %v1091, -0.5
        %v1248 = vmul.f32 %v1092, -0.5
        %v1249 = vmul.f32 %v1093, -0.5
        %v1250 = vmul.f32 %v1094, -0.5
        %v1251 = vmul.f32 %v1095, -0.5
        %v1252 = vmul.f32 %v1096, -0.5
        %v1253 = vmul.f32 %v1097, -0.5
        %v1254 = vmul.f32 %v1098, -0.5
        %v1255 = vmul.f32 %v1099, -0.5
        %v1256 = vmul.f32 %v1100, -0.5
        %v1257 = vmul.f32 %v1101, -0.5
        %v1258 = vmul.f32 %v1245, %v1089
        %v1259 = vmul.f32 %v1246, %v1090
        %v1260 = vmul.f32 %v1247, %v1091
        %v1261 = vmul.f32 %v1248, %v1092
        %v1262 = vmul.f32 %v1249, %v1093
        %v1263 = vmul.f32 %v1250, %v1094
        %v1264 = vmul.f32 %v1251, %v1095
        %v1265 = vmul.f32 %v1252, %v1096
        %v1266 = vmul.f32 %v1253, %v1097
        %v1267 = vmul.f32 %v1254, %v1098
        %v1268 = vmul.f32 %v1255, %v1099
        %v1269 = vmul.f32 %v1256, %v1100
        %v1270 = vmul.f32 %v1257, %v1101
        %1284 = vrot.lane.b32.xlu0 %v1050, 116
        %v1285 = vpop.permute.xlu0 %1284
        %1286 = vrot.lane.b32.xlu0 %v1051, 116
        %v1287 = vpop.permute.xlu0 %1286
        %1288 = vrot.lane.b32.xlu0 %v1052, 116
        %v1289 = vpop.permute.xlu0 %1288
        %1290 = vrot.lane.b32.xlu0 %v1053, 116
        %v1291 = vpop.permute.xlu0 %1290
        %1292 = vrot.lane.b32.xlu0 %v1054, 116
        %v1293 = vpop.permute.xlu0 %1292
        %1294 = vrot.lane.b32.xlu0 %v1055, 116
        %v1295 = vpop.permute.xlu0 %1294
        %1296 = vrot.lane.b32.xlu0 %v1056, 116
        %v1297 = vpop.permute.xlu0 %1296
        %1298 = vrot.lane.b32.xlu0 %v1057, 116
        %v1299 = vpop.permute.xlu0 %1298
        %1300 = vrot.lane.b32.xlu0 %v1058, 116
        %v1301 = vpop.permute.xlu0 %1300
        %1302 = vrot.lane.b32.xlu0 %v1059, 116
        %v1303 = vpop.permute.xlu0 %1302
        %1304 = vrot.lane.b32.xlu0 %v1060, 116
        %v1305 = vpop.permute.xlu0 %1304
        %1306 = vrot.lane.b32.xlu0 %v1061, 116
        %v1307 = vpop.permute.xlu0 %1306
        %1308 = vrot.lane.b32.xlu0 %v1062, 116
        %v1309 = vpop.permute.xlu0 %1308
        %v1323 = vsub.f32 %v1258, %v1285
        %v1324 = vsub.f32 %v1259, %v1287
        %v1325 = vsub.f32 %v1260, %v1289
        %v1326 = vsub.f32 %v1261, %v1291
        %v1327 = vsub.f32 %v1262, %v1293
        %v1328 = vsub.f32 %v1263, %v1295
        %v1329 = vsub.f32 %v1264, %v1297
        %v1330 = vsub.f32 %v1265, %v1299
        %v1331 = vsub.f32 %v1266, %v1301
        %v1332 = vsub.f32 %v1267, %v1303
        %v1333 = vsub.f32 %v1268, %v1305
        %v1334 = vsub.f32 %v1269, %v1307
        %v1335 = vsub.f32 %v1270, %v1309
        %v1336 = vsub.f32 %v1323, 0.9189385
        %v1337 = vsub.f32 %v1324, 0.9189385
        %v1338 = vsub.f32 %v1325, 0.9189385
        %v1339 = vsub.f32 %v1326, 0.9189385
        %v1340 = vsub.f32 %v1327, 0.9189385
        %v1341 = vsub.f32 %v1328, 0.9189385
        %v1342 = vsub.f32 %v1329, 0.9189385
        %v1343 = vsub.f32 %v1330, 0.9189385
        %v1344 = vsub.f32 %v1331, 0.9189385
        %v1345 = vsub.f32 %v1332, 0.9189385
        %v1346 = vsub.f32 %v1333, 0.9189385
        %v1347 = vsub.f32 %v1334, 0.9189385
        %v1348 = vsub.f32 %v1335, 0.9189385
        %v1349 = vmul.f32 %v1232, %v1232
        %v1350 = vmul.f32 %v1233, %v1233
        %v1351 = vmul.f32 %v1234, %v1234
        %v1352 = vmul.f32 %v1235, %v1235
        %v1353 = vmul.f32 %v1236, %v1236
        %v1354 = vmul.f32 %v1237, %v1237
        %v1355 = vmul.f32 %v1238, %v1238
        %v1356 = vmul.f32 %v1239, %v1239
        %v1357 = vmul.f32 %v1240, %v1240
        %v1358 = vmul.f32 %v1241, %v1241
        %v1359 = vmul.f32 %v1242, %v1242
        %v1360 = vmul.f32 %v1243, %v1243
        %v1361 = vmul.f32 %v1244, %v1244
        %v1362 = vsub.f32 1.0, %v1349
        %v1363 = vsub.f32 1.0, %v1350
        %v1364 = vsub.f32 1.0, %v1351
        %v1365 = vsub.f32 1.0, %v1352
        %v1366 = vsub.f32 1.0, %v1353
        %v1367 = vsub.f32 1.0, %v1354
        %v1368 = vsub.f32 1.0, %v1355
        %v1369 = vsub.f32 1.0, %v1356
        %v1370 = vsub.f32 1.0, %v1357
        %v1371 = vsub.f32 1.0, %v1358
        %v1372 = vsub.f32 1.0, %v1359
        %v1373 = vsub.f32 1.0, %v1360
        %v1374 = vsub.f32 1.0, %v1361
        %v1375 = vadd.f32 %v1362, 1e-06
        %v1376 = vadd.f32 %v1363, 1e-06
        %v1377 = vadd.f32 %v1364, 1e-06
        %v1378 = vadd.f32 %v1365, 1e-06
        %v1379 = vadd.f32 %v1366, 1e-06
        %v1380 = vadd.f32 %v1367, 1e-06
        %v1381 = vadd.f32 %v1368, 1e-06
        %v1382 = vadd.f32 %v1369, 1e-06
        %v1383 = vadd.f32 %v1370, 1e-06
        %v1384 = vadd.f32 %v1371, 1e-06
        %v1385 = vadd.f32 %v1372, 1e-06
        %v1386 = vadd.f32 %v1373, 1e-06
        %v1387 = vadd.f32 %v1374, 1e-06
        %v1388 = vlog2.pop %v1375
        %v1389 = vmul.f32 %v1388, 0.6931472
        %v1390 = vlog2.pop %v1376
        %v1391 = vmul.f32 %v1390, 0.6931472
        %v1392 = vlog2.pop %v1377
        %v1393 = vmul.f32 %v1392, 0.6931472
        %v1394 = vlog2.pop %v1378
        %v1395 = vmul.f32 %v1394, 0.6931472
        %v1396 = vlog2.pop %v1379
        %v1397 = vmul.f32 %v1396, 0.6931472
        %v1398 = vlog2.pop %v1380
        %v1399 = vmul.f32 %v1398, 0.6931472
        %v1400 = vlog2.pop %v1381
        %v1401 = vmul.f32 %v1400, 0.6931472
        %v1402 = vlog2.pop %v1382
        %v1403 = vmul.f32 %v1402, 0.6931472
        %v1404 = vlog2.pop %v1383
        %v1405 = vmul.f32 %v1404, 0.6931472
        %v1406 = vlog2.pop %v1384
        %v1407 = vmul.f32 %v1406, 0.6931472
        %v1408 = vlog2.pop %v1385
        %v1409 = vmul.f32 %v1408, 0.6931472
        %v1410 = vlog2.pop %v1386
        %v1411 = vmul.f32 %v1410, 0.6931472
        %v1412 = vlog2.pop %v1387
        %v1413 = vmul.f32 %v1412, 0.6931472
        %v1414 = vsub.f32 %v1336, %v1389
        %v1415 = vsub.f32 %v1337, %v1391
        %v1416 = vsub.f32 %v1338, %v1393
        %v1417 = vsub.f32 %v1339, %v1395
        %v1418 = vsub.f32 %v1340, %v1397
        %v1419 = vsub.f32 %v1341, %v1399
        %v1420 = vsub.f32 %v1342, %v1401
        %v1421 = vsub.f32 %v1343, %v1403
        %v1422 = vsub.f32 %v1344, %v1405
        %v1423 = vsub.f32 %v1345, %v1407
        %v1424 = vsub.f32 %v1346, %v1409
        %v1425 = vsub.f32 %v1347, %v1411
        %v1426 = vsub.f32 %v1348, %v1413
        %vm1427 = vcmask 97280
        %1428 = vst.msk [vmem:[%s390] sm:$0xff] %vm1427, %v1232
        %1429 = vst.msk [vmem:[%s390 + $0x8] sm:$0xff] %vm1427, %v1233
        %1430 = vst.msk [vmem:[%s390 + $0x10] sm:$0xff] %vm1427, %v1234
        %1431 = vst.msk [vmem:[%s390 + $0x18] sm:$0xff] %vm1427, %v1235
        %1432 = vst.msk [vmem:[%s390 + $0x20] sm:$0xff] %vm1427, %v1236
        %1433 = vst.msk [vmem:[%s390 + $0x28] sm:$0xff] %vm1427, %v1237
        %1434 = vst.msk [vmem:[%s390 + $0x30] sm:$0xff] %vm1427, %v1238
        %1435 = vst.msk [vmem:[%s390 + $0x38] sm:$0xff] %vm1427, %v1239
        %1436 = vst.msk [vmem:[%s390 + $0x40] sm:$0xff] %vm1427, %v1240
        %1437 = vst.msk [vmem:[%s390 + $0x48] sm:$0xff] %vm1427, %v1241
        %1438 = vst.msk [vmem:[%s390 + $0x50] sm:$0xff] %vm1427, %v1242
        %1439 = vst.msk [vmem:[%s390 + $0x58] sm:$0xff] %vm1427, %v1243
        %1440 = vst.msk [vmem:[%s390 + $0x60] sm:$0xff] %vm1427, %v1244
        %v1441 = vsel %vm1427, %v1414, 0.0
        %1442 = vadd.xlane.f32.xlu0 %v1441
        %v1443 = vpop.xlane.xlu0 %1442
        %v1444 = vsel %vm1427, %v1415, 0.0
        %1445 = vadd.xlane.f32.xlu0 %v1444
        %v1446 = vpop.xlane.xlu0 %1445
        %v1447 = vsel %vm1427, %v1416, 0.0
        %1448 = vadd.xlane.f32.xlu0 %v1447
        %v1449 = vpop.xlane.xlu0 %1448
        %v1450 = vsel %vm1427, %v1417, 0.0
        %1451 = vadd.xlane.f32.xlu0 %v1450
        %v1452 = vpop.xlane.xlu0 %1451
        %v1453 = vsel %vm1427, %v1418, 0.0
        %1454 = vadd.xlane.f32.xlu0 %v1453
        %v1455 = vpop.xlane.xlu0 %1454
        %v1456 = vsel %vm1427, %v1419, 0.0
        %1457 = vadd.xlane.f32.xlu0 %v1456
        %v1458 = vpop.xlane.xlu0 %1457
        %v1459 = vsel %vm1427, %v1420, 0.0
        %1460 = vadd.xlane.f32.xlu0 %v1459
        %v1461 = vpop.xlane.xlu0 %1460
        %v1462 = vsel %vm1427, %v1421, 0.0
        %1463 = vadd.xlane.f32.xlu0 %v1462
        %v1464 = vpop.xlane.xlu0 %1463
        %v1465 = vsel %vm1427, %v1422, 0.0
        %1466 = vadd.xlane.f32.xlu0 %v1465
        %v1467 = vpop.xlane.xlu0 %1466
        %v1468 = vsel %vm1427, %v1423, 0.0
        %1469 = vadd.xlane.f32.xlu0 %v1468
        %v1470 = vpop.xlane.xlu0 %1469
        %v1471 = vsel %vm1427, %v1424, 0.0
        %1472 = vadd.xlane.f32.xlu0 %v1471
        %v1473 = vpop.xlane.xlu0 %1472
        %v1474 = vsel %vm1427, %v1425, 0.0
        %1475 = vadd.xlane.f32.xlu0 %v1474
        %v1476 = vpop.xlane.xlu0 %1475
        %v1477 = vsel %vm1427, %v1426, 0.0
        %1478 = vadd.xlane.f32.xlu0 %v1477
        %v1479 = vpop.xlane.xlu0 %1478
        %vm1480 = vcmask 7168
        %1481 = vst.msk [vmem:[%s396] sm:$0xff] %vm1480, %v1443
        %1482 = vst.msk [vmem:[%s396 + $0x8] sm:$0xff] %vm1480, %v1446
        %1483 = vst.msk [vmem:[%s396 + $0x10] sm:$0xff] %vm1480, %v1449
        %1484 = vst.msk [vmem:[%s396 + $0x18] sm:$0xff] %vm1480, %v1452
        %1485 = vst.msk [vmem:[%s396 + $0x20] sm:$0xff] %vm1480, %v1455
        %1486 = vst.msk [vmem:[%s396 + $0x28] sm:$0xff] %vm1480, %v1458
        %1487 = vst.msk [vmem:[%s396 + $0x30] sm:$0xff] %vm1480, %v1461
        %1488 = vst.msk [vmem:[%s396 + $0x38] sm:$0xff] %vm1480, %v1464
        %1489 = vst.msk [vmem:[%s396 + $0x40] sm:$0xff] %vm1480, %v1467
        %1490 = vst.msk [vmem:[%s396 + $0x48] sm:$0xff] %vm1480, %v1470
        %1491 = vst.msk [vmem:[%s396 + $0x50] sm:$0xff] %vm1480, %v1473
        %1492 = vst.msk [vmem:[%s396 + $0x58] sm:$0xff] %vm1480, %v1476
        %1493 = vst.msk [vmem:[%s396 + $0x60] sm:$0xff] %vm1480, %v1479
        %1507 = vrot.lane.b32.xlu0 %v1064, 116
        %v1508 = vpop.permute.xlu0 %1507
        %1509 = vrot.lane.b32.xlu0 %v1066, 116
        %v1510 = vpop.permute.xlu0 %1509
        %1511 = vrot.lane.b32.xlu0 %v1068, 116
        %v1512 = vpop.permute.xlu0 %1511
        %1513 = vrot.lane.b32.xlu0 %v1070, 116
        %v1514 = vpop.permute.xlu0 %1513
        %1515 = vrot.lane.b32.xlu0 %v1072, 116
        %v1516 = vpop.permute.xlu0 %1515
        %1517 = vrot.lane.b32.xlu0 %v1074, 116
        %v1518 = vpop.permute.xlu0 %1517
        %1519 = vrot.lane.b32.xlu0 %v1076, 116
        %v1520 = vpop.permute.xlu0 %1519
        %1521 = vrot.lane.b32.xlu0 %v1078, 116
        %v1522 = vpop.permute.xlu0 %1521
        %1523 = vrot.lane.b32.xlu0 %v1080, 116
        %v1524 = vpop.permute.xlu0 %1523
        %1525 = vrot.lane.b32.xlu0 %v1082, 116
        %v1526 = vpop.permute.xlu0 %1525
        %1527 = vrot.lane.b32.xlu0 %v1084, 116
        %v1528 = vpop.permute.xlu0 %1527
        %1529 = vrot.lane.b32.xlu0 %v1086, 116
        %v1530 = vpop.permute.xlu0 %1529
        %1531 = vrot.lane.b32.xlu0 %v1088, 116
        %v1532 = vpop.permute.xlu0 %1531
        %1546 = vst.msk [vmem:[%s402] sm:$0xff] %vm1427, %v1508
        %1547 = vst.msk [vmem:[%s402 + $0x8] sm:$0xff] %vm1427, %v1510
        %1548 = vst.msk [vmem:[%s402 + $0x10] sm:$0xff] %vm1427, %v1512
        %1549 = vst.msk [vmem:[%s402 + $0x18] sm:$0xff] %vm1427, %v1514
        %1550 = vst.msk [vmem:[%s402 + $0x20] sm:$0xff] %vm1427, %v1516
        %1551 = vst.msk [vmem:[%s402 + $0x28] sm:$0xff] %vm1427, %v1518
        %1552 = vst.msk [vmem:[%s402 + $0x30] sm:$0xff] %vm1427, %v1520
        %1553 = vst.msk [vmem:[%s402 + $0x38] sm:$0xff] %vm1427, %v1522
        %1554 = vst.msk [vmem:[%s402 + $0x40] sm:$0xff] %vm1427, %v1524
        %1555 = vst.msk [vmem:[%s402 + $0x48] sm:$0xff] %vm1427, %v1526
        %1556 = vst.msk [vmem:[%s402 + $0x50] sm:$0xff] %vm1427, %v1528
        %1557 = vst.msk [vmem:[%s402 + $0x58] sm:$0xff] %vm1427, %v1530
        %1558 = vst.msk [vmem:[%s402 + $0x60] sm:$0xff] %vm1427, %v1532
        %s1559 = sand.u32 %s208, 1
        %s1560 = sand.u32 %s208, 1
        %s1561 = smul.addr %s1560, 104
        %s1562 = scalar_lea.vmem [#allocation2], %s1561
        %s1563 = sand.u32 %s234, 1
        %s1564 = sand.u32 %s234, 1
        %s1565 = smul.addr %s1564, 104
        %s1566 = scalar_lea.vmem [#allocation3], %s1565
        %s1567 = sand.u32 %s260, 1
        %s1568 = sand.u32 %s260, 1
        %s1569 = smul.addr %s1568, 104
        %s1570 = scalar_lea.vmem [#allocation4], %s1569
        // Predicated region
        $region53: #{tpu_custom_call.1} parent=51 // pred_check
          %p1571 = pneg %p218
        $region54: #{tpu_custom_call.1} parent=51 // pred_check_branch
          %1573 = sbr.rel (%p1571) target = $region56
        $region55: #{tpu_custom_call.1} parent=51 // pred_region
          %s1574 = smul.u32 13, %s22
          %s1575 = ssub.s32 25, %s1574
          %p1576 = scmp.lt.s32.totalorder %s1575, 13
          %s1577 = scalar_select %p1576, %s1575, 13
          %s1578 = smul.u32 128, %s1577
          %p1579 = scmp.ne.s32.totalorder 0, %s1578
          %s1580 = smul.addr %s1574, 8
          %s1581 = scalar_lea.vmem %s8, %s1580
          // Predicated region
          $region57: #{tpu_custom_call.1} parent=55 // pred_check
            %p1582 = pneg %p1579
          $region58: #{tpu_custom_call.1} parent=55 // pred_check_branch
            %1584 = sbr.rel (%p1582) target = $region60
          $region59: #{tpu_custom_call.1} parent=55 // pred_region
            // Predicated region
            $region61: #{tpu_custom_call.1} parent=59 // pred_check
              _
            $region62: #{tpu_custom_call.1} parent=59 // pred_check_branch
              %1586 = sbr.rel (0) target = $region64
            $region63: #{tpu_custom_call.1} parent=59 // pred_region
              // Predicated region
              $region83: #{tpu_custom_call.1} parent=63 // pred_check
                _
              $region84: #{tpu_custom_call.1} parent=63 // pred_check_branch
                %1660 = sbr.rel (0) target = $region86
              $region85: #{tpu_custom_call.1} parent=63 // pred_region
                %s1661 = sdiv.u32.pop %s1577, 13
                %s1662 = srem.u32.pop %s1577, 13
                // While loop
                $region87: #{tpu_custom_call.1} parent=85 // loop_pre_header
                  _
                $region88: #{tpu_custom_call.1} parent=85 // loop_header
                  %s1664 = sphi 0, %s1666
                  %p1665 = scmp.ge.s32.totalorder %s1664, %s1661
                  %s1669 = sphi 0, %s1700
                  %s1670 = sphi %s1562, %s1703
                  %s1671 = sphi %s1581, %s1704
                $region89: #{tpu_custom_call.1} parent=85 // loop_header_branch
                  %1668 = sbr.rel (%p1665) target = $region93
                $region90: #{tpu_custom_call.1} parent=85 // loop_body
                  %v1672 = vld [vmem:[%s1670] sm:$0xff]
                  %1673 = vst [vmem:[%s1671] sm:$0xff] %v1672
                  %v1674 = vld [vmem:[%s1670 + $0x8] sm:$0xff]
                  %1675 = vst [vmem:[%s1671 + $0x8] sm:$0xff] %v1674
                  %v1676 = vld [vmem:[%s1670 + $0x10] sm:$0xff]
                  %1677 = vst [vmem:[%s1671 + $0x10] sm:$0xff] %v1676
                  %v1678 = vld [vmem:[%s1670 + $0x18] sm:$0xff]
                  %1679 = vst [vmem:[%s1671 + $0x18] sm:$0xff] %v1678
                  %v1680 = vld [vmem:[%s1670 + $0x20] sm:$0xff]
                  %1681 = vst [vmem:[%s1671 + $0x20] sm:$0xff] %v1680
                  %v1682 = vld [vmem:[%s1670 + $0x28] sm:$0xff]
                  %1683 = vst [vmem:[%s1671 + $0x28] sm:$0xff] %v1682
                  %v1684 = vld [vmem:[%s1670 + $0x30] sm:$0xff]
                  %1685 = vst [vmem:[%s1671 + $0x30] sm:$0xff] %v1684
                  %v1686 = vld [vmem:[%s1670 + $0x38] sm:$0xff]
                  %1687 = vst [vmem:[%s1671 + $0x38] sm:$0xff] %v1686
                  %v1688 = vld [vmem:[%s1670 + $0x40] sm:$0xff]
                  %1689 = vst [vmem:[%s1671 + $0x40] sm:$0xff] %v1688
                  %v1690 = vld [vmem:[%s1670 + $0x48] sm:$0xff]
                  %1691 = vst [vmem:[%s1671 + $0x48] sm:$0xff] %v1690
                  %v1692 = vld [vmem:[%s1670 + $0x50] sm:$0xff]
                  %1693 = vst [vmem:[%s1671 + $0x50] sm:$0xff] %v1692
                  %v1694 = vld [vmem:[%s1670 + $0x58] sm:$0xff]
                  %1695 = vst [vmem:[%s1671 + $0x58] sm:$0xff] %v1694
                  %v1696 = vld [vmem:[%s1670 + $0x60] sm:$0xff]
                  %1697 = vst [vmem:[%s1671 + $0x60] sm:$0xff] %v1696
                  %s1698 = sadd.s32 1, %s1669
                  %p1699 = scmp.ge.s32.totalorder %s1698, %s1661
                  %s1700 = scalar_select %p1699, 0, %s1698
                  %s1701 = smul.u32 %s1700, 104
                  %s1702 = smul.u32 %s1700, 104
                  %s1703 = scalar_lea.vmem %s1562, %s1701 [#allocation2]
                  %s1704 = scalar_lea.vmem %s1581, %s1702
                $region91: #{tpu_custom_call.1} parent=85 // loop_footer
                  %s1666 = sadd.s32 %s1664, 1
                $region92: #{tpu_custom_call.1} parent=85 // loop_footer_branch
                  %1663 = sbr.rel target = $region88
                $region93: #{tpu_custom_call.1} parent=85 // loop_exit
                  _
                %s1705 = sdiv.u32.pop %s1577, 13
                %s1706 = srem.u32.pop %s1577, 13
                %s1707 = smul.u32 %s1705, 13
                %s1708 = smul.u32 8, %s1707
                %s1709 = scalar_lea.vmem %s1562, %s1708 [#allocation2]
                %s1710 = smul.u32 8, %s1707
                %s1711 = scalar_lea.vmem %s1581, %s1710
                // While loop
                $region94: #{tpu_custom_call.1} parent=85 // loop_pre_header
                  _
                $region95: #{tpu_custom_call.1} parent=85 // loop_header
                  %s1713 = sphi 0, %s1715
                  %p1714 = scmp.ge.s32.totalorder %s1713, %s1706
                  %s1718 = sphi 0, %s1725
                  %s1719 = sphi %s1709, %s1728
                  %s1720 = sphi %s1711, %s1729
                $region96: #{tpu_custom_call.1} parent=85 // loop_header_branch
                  %1717 = sbr.rel (%p1714) target = $region100
                $region97: #{tpu_custom_call.1} parent=85 // loop_body
                  %v1721 = vld [vmem:[%s1719] sm:$0xff]
                  %1722 = vst [vmem:[%s1720] sm:$0xff] %v1721
                  %s1723 = sadd.s32 1, %s1718
                  %p1724 = scmp.ge.s32.totalorder %s1723, %s1706
                  %s1725 = scalar_select %p1724, 0, %s1723
                  %s1726 = smul.u32 %s1725, 8
                  %s1727 = smul.u32 %s1725, 8
                  %s1728 = scalar_lea.vmem %s1709, %s1726 [#allocation2]
                  %s1729 = scalar_lea.vmem %s1711, %s1727
                $region98: #{tpu_custom_call.1} parent=85 // loop_footer
                  %s1715 = sadd.s32 %s1713, 1
                $region99: #{tpu_custom_call.1} parent=85 // loop_footer_branch
                  %1712 = sbr.rel target = $region95
                $region100: #{tpu_custom_call.1} parent=85 // loop_exit
                  _
              $region86: #{tpu_custom_call.1} parent=63 // pred_fallthru
                _
              // Predicated region
              $region101: #{tpu_custom_call.1} parent=63 // pred_check
                _
              $region102: #{tpu_custom_call.1} parent=63 // pred_check_branch
                %1731 = sbr.rel target = $region104
              $region103: #{tpu_custom_call.1} parent=63 // pred_region
                _
              $region104: #{tpu_custom_call.1} parent=63 // pred_fallthru
                _
            $region64: #{tpu_custom_call.1} parent=59 // pred_fallthru
              _
            // Predicated region
            $region65: #{tpu_custom_call.1} parent=59 // pred_check
              _
            $region66: #{tpu_custom_call.1} parent=59 // pred_check_branch
              %1588 = sbr.rel target = $region68
            $region67: #{tpu_custom_call.1} parent=59 // pred_region
              %s1590 = sdiv.u32.pop %s1577, 13
              %s1591 = srem.u32.pop %s1577, 13
              // While loop
              $region69: #{tpu_custom_call.1} parent=67 // loop_pre_header
                _
              $region70: #{tpu_custom_call.1} parent=67 // loop_header
                %s1593 = sphi 0, %s1595
                %p1594 = scmp.ge.s32.totalorder %s1593, %s1590
                %s1598 = sphi 0, %s1629
                %s1599 = sphi %s1562, %s1632
                %s1600 = sphi %s1581, %s1633
              $region71: #{tpu_custom_call.1} parent=67 // loop_header_branch
                %1597 = sbr.rel (%p1594) target = $region75
              $region72: #{tpu_custom_call.1} parent=67 // loop_body
                %v1601 = vld [vmem:[%s1599] sm:$0xff]
                %1602 = vst [vmem:[%s1600] sm:$0xff] %v1601
                %v1603 = vld [vmem:[%s1599 + $0x8] sm:$0xff]
                %1604 = vst [vmem:[%s1600 + $0x8] sm:$0xff] %v1603
                %v1605 = vld [vmem:[%s1599 + $0x10] sm:$0xff]
                %1606 = vst [vmem:[%s1600 + $0x10] sm:$0xff] %v1605
                %v1607 = vld [vmem:[%s1599 + $0x18] sm:$0xff]
                %1608 = vst [vmem:[%s1600 + $0x18] sm:$0xff] %v1607
                %v1609 = vld [vmem:[%s1599 + $0x20] sm:$0xff]
                %1610 = vst [vmem:[%s1600 + $0x20] sm:$0xff] %v1609
                %v1611 = vld [vmem:[%s1599 + $0x28] sm:$0xff]
                %1612 = vst [vmem:[%s1600 + $0x28] sm:$0xff] %v1611
                %v1613 = vld [vmem:[%s1599 + $0x30] sm:$0xff]
                %1614 = vst [vmem:[%s1600 + $0x30] sm:$0xff] %v1613
                %v1615 = vld [vmem:[%s1599 + $0x38] sm:$0xff]
                %1616 = vst [vmem:[%s1600 + $0x38] sm:$0xff] %v1615
                %v1617 = vld [vmem:[%s1599 + $0x40] sm:$0xff]
                %1618 = vst [vmem:[%s1600 + $0x40] sm:$0xff] %v1617
                %v1619 = vld [vmem:[%s1599 + $0x48] sm:$0xff]
                %1620 = vst [vmem:[%s1600 + $0x48] sm:$0xff] %v1619
                %v1621 = vld [vmem:[%s1599 + $0x50] sm:$0xff]
                %1622 = vst [vmem:[%s1600 + $0x50] sm:$0xff] %v1621
                %v1623 = vld [vmem:[%s1599 + $0x58] sm:$0xff]
                %1624 = vst [vmem:[%s1600 + $0x58] sm:$0xff] %v1623
                %v1625 = vld [vmem:[%s1599 + $0x60] sm:$0xff]
                %1626 = vst [vmem:[%s1600 + $0x60] sm:$0xff] %v1625
                %s1627 = sadd.s32 1, %s1598
                %p1628 = scmp.ge.s32.totalorder %s1627, %s1590
                %s1629 = scalar_select %p1628, 0, %s1627
                %s1630 = smul.u32 %s1629, 104
                %s1631 = smul.u32 %s1629, 104
                %s1632 = scalar_lea.vmem %s1562, %s1630 [#allocation2]
                %s1633 = scalar_lea.vmem %s1581, %s1631
              $region73: #{tpu_custom_call.1} parent=67 // loop_footer
                %s1595 = sadd.s32 %s1593, 1
              $region74: #{tpu_custom_call.1} parent=67 // loop_footer_branch
                %1592 = sbr.rel target = $region70
              $region75: #{tpu_custom_call.1} parent=67 // loop_exit
                _
              %s1634 = sdiv.u32.pop %s1577, 13
              %s1635 = srem.u32.pop %s1577, 13
              %s1636 = smul.u32 %s1634, 13
              %s1637 = smul.u32 8, %s1636
              %s1638 = scalar_lea.vmem %s1562, %s1637 [#allocation2]
              %s1639 = smul.u32 8, %s1636
              %s1640 = scalar_lea.vmem %s1581, %s1639
              // While loop
              $region76: #{tpu_custom_call.1} parent=67 // loop_pre_header
                _
              $region77: #{tpu_custom_call.1} parent=67 // loop_header
                %s1642 = sphi 0, %s1644
                %p1643 = scmp.ge.s32.totalorder %s1642, %s1635
                %s1647 = sphi 0, %s1654
                %s1648 = sphi %s1638, %s1657
                %s1649 = sphi %s1640, %s1658
              $region78: #{tpu_custom_call.1} parent=67 // loop_header_branch
                %1646 = sbr.rel (%p1643) target = $region82
              $region79: #{tpu_custom_call.1} parent=67 // loop_body
                %v1650 = vld [vmem:[%s1648] sm:$0xff]
                %1651 = vst [vmem:[%s1649] sm:$0xff] %v1650
                %s1652 = sadd.s32 1, %s1647
                %p1653 = scmp.ge.s32.totalorder %s1652, %s1635
                %s1654 = scalar_select %p1653, 0, %s1652
                %s1655 = smul.u32 %s1654, 8
                %s1656 = smul.u32 %s1654, 8
                %s1657 = scalar_lea.vmem %s1638, %s1655 [#allocation2]
                %s1658 = scalar_lea.vmem %s1640, %s1656
              $region80: #{tpu_custom_call.1} parent=67 // loop_footer
                %s1644 = sadd.s32 %s1642, 1
              $region81: #{tpu_custom_call.1} parent=67 // loop_footer_branch
                %1641 = sbr.rel target = $region77
              $region82: #{tpu_custom_call.1} parent=67 // loop_exit
                _
            $region68: #{tpu_custom_call.1} parent=59 // pred_fallthru
              _
          $region60: #{tpu_custom_call.1} parent=55 // pred_fallthru
            _
          %1732 = vnop
        $region56: #{tpu_custom_call.1} parent=51 // pred_fallthru
          _
        // Predicated region
        $region105: #{tpu_custom_call.1} parent=51 // pred_check
          %p1733 = pneg %p244
        $region106: #{tpu_custom_call.1} parent=51 // pred_check_branch
          %1735 = sbr.rel (%p1733) target = $region108
        $region107: #{tpu_custom_call.1} parent=51 // pred_region
          %s1736 = smul.u32 13, %s22
          %s1737 = ssub.s32 25, %s1736
          %p1738 = scmp.lt.s32.totalorder %s1737, 13
          %s1739 = scalar_select %p1738, %s1737, 13
          %s1740 = smul.u32 128, %s1739
          %p1741 = scmp.ne.s32.totalorder 0, %s1740
          %s1742 = smul.addr %s1736, 8
          %s1743 = scalar_lea.vmem %s9, %s1742
          // Predicated region
          $region109: #{tpu_custom_call.1} parent=107 // pred_check
            %p1744 = pneg %p1741
          $region110: #{tpu_custom_call.1} parent=107 // pred_check_branch
            %1746 = sbr.rel (%p1744) target = $region112
          $region111: #{tpu_custom_call.1} parent=107 // pred_region
            // Predicated region
            $region113: #{tpu_custom_call.1} parent=111 // pred_check
              _
            $region114: #{tpu_custom_call.1} parent=111 // pred_check_branch
              %1748 = sbr.rel (0) target = $region116
            $region115: #{tpu_custom_call.1} parent=111 // pred_region
              // Predicated region
              $region135: #{tpu_custom_call.1} parent=115 // pred_check
                _
              $region136: #{tpu_custom_call.1} parent=115 // pred_check_branch
                %1822 = sbr.rel (0) target = $region138
              $region137: #{tpu_custom_call.1} parent=115 // pred_region
                %s1823 = sdiv.u32.pop %s1739, 13
                %s1824 = srem.u32.pop %s1739, 13
                // While loop
                $region139: #{tpu_custom_call.1} parent=137 // loop_pre_header
                  _
                $region140: #{tpu_custom_call.1} parent=137 // loop_header
                  %s1826 = sphi 0, %s1828
                  %p1827 = scmp.ge.s32.totalorder %s1826, %s1823
                  %s1831 = sphi 0, %s1862
                  %s1832 = sphi %s1566, %s1865
                  %s1833 = sphi %s1743, %s1866
                $region141: #{tpu_custom_call.1} parent=137 // loop_header_branch
                  %1830 = sbr.rel (%p1827) target = $region145
                $region142: #{tpu_custom_call.1} parent=137 // loop_body
                  %v1834 = vld [vmem:[%s1832] sm:$0xff]
                  %1835 = vst [vmem:[%s1833] sm:$0xff] %v1834
                  %v1836 = vld [vmem:[%s1832 + $0x8] sm:$0xff]
                  %1837 = vst [vmem:[%s1833 + $0x8] sm:$0xff] %v1836
                  %v1838 = vld [vmem:[%s1832 + $0x10] sm:$0xff]
                  %1839 = vst [vmem:[%s1833 + $0x10] sm:$0xff] %v1838
                  %v1840 = vld [vmem:[%s1832 + $0x18] sm:$0xff]
                  %1841 = vst [vmem:[%s1833 + $0x18] sm:$0xff] %v1840
                  %v1842 = vld [vmem:[%s1832 + $0x20] sm:$0xff]
                  %1843 = vst [vmem:[%s1833 + $0x20] sm:$0xff] %v1842
                  %v1844 = vld [vmem:[%s1832 + $0x28] sm:$0xff]
                  %1845 = vst [vmem:[%s1833 + $0x28] sm:$0xff] %v1844
                  %v1846 = vld [vmem:[%s1832 + $0x30] sm:$0xff]
                  %1847 = vst [vmem:[%s1833 + $0x30] sm:$0xff] %v1846
                  %v1848 = vld [vmem:[%s1832 + $0x38] sm:$0xff]
                  %1849 = vst [vmem:[%s1833 + $0x38] sm:$0xff] %v1848
                  %v1850 = vld [vmem:[%s1832 + $0x40] sm:$0xff]
                  %1851 = vst [vmem:[%s1833 + $0x40] sm:$0xff] %v1850
                  %v1852 = vld [vmem:[%s1832 + $0x48] sm:$0xff]
                  %1853 = vst [vmem:[%s1833 + $0x48] sm:$0xff] %v1852
                  %v1854 = vld [vmem:[%s1832 + $0x50] sm:$0xff]
                  %1855 = vst [vmem:[%s1833 + $0x50] sm:$0xff] %v1854
                  %v1856 = vld [vmem:[%s1832 + $0x58] sm:$0xff]
                  %1857 = vst [vmem:[%s1833 + $0x58] sm:$0xff] %v1856
                  %v1858 = vld [vmem:[%s1832 + $0x60] sm:$0xff]
                  %1859 = vst [vmem:[%s1833 + $0x60] sm:$0xff] %v1858
                  %s1860 = sadd.s32 1, %s1831
                  %p1861 = scmp.ge.s32.totalorder %s1860, %s1823
                  %s1862 = scalar_select %p1861, 0, %s1860
                  %s1863 = smul.u32 %s1862, 104
                  %s1864 = smul.u32 %s1862, 104
                  %s1865 = scalar_lea.vmem %s1566, %s1863 [#allocation3]
                  %s1866 = scalar_lea.vmem %s1743, %s1864
                $region143: #{tpu_custom_call.1} parent=137 // loop_footer
                  %s1828 = sadd.s32 %s1826, 1
                $region144: #{tpu_custom_call.1} parent=137 // loop_footer_branch
                  %1825 = sbr.rel target = $region140
                $region145: #{tpu_custom_call.1} parent=137 // loop_exit
                  _
                %s1867 = sdiv.u32.pop %s1739, 13
                %s1868 = srem.u32.pop %s1739, 13
                %s1869 = smul.u32 %s1867, 13
                %s1870 = smul.u32 8, %s1869
                %s1871 = scalar_lea.vmem %s1566, %s1870 [#allocation3]
                %s1872 = smul.u32 8, %s1869
                %s1873 = scalar_lea.vmem %s1743, %s1872
                // While loop
                $region146: #{tpu_custom_call.1} parent=137 // loop_pre_header
                  _
                $region147: #{tpu_custom_call.1} parent=137 // loop_header
                  %s1875 = sphi 0, %s1877
                  %p1876 = scmp.ge.s32.totalorder %s1875, %s1868
                  %s1880 = sphi 0, %s1887
                  %s1881 = sphi %s1871, %s1890
                  %s1882 = sphi %s1873, %s1891
                $region148: #{tpu_custom_call.1} parent=137 // loop_header_branch
                  %1879 = sbr.rel (%p1876) target = $region152
                $region149: #{tpu_custom_call.1} parent=137 // loop_body
                  %v1883 = vld [vmem:[%s1881] sm:$0xff]
                  %1884 = vst [vmem:[%s1882] sm:$0xff] %v1883
                  %s1885 = sadd.s32 1, %s1880
                  %p1886 = scmp.ge.s32.totalorder %s1885, %s1868
                  %s1887 = scalar_select %p1886, 0, %s1885
                  %s1888 = smul.u32 %s1887, 8
                  %s1889 = smul.u32 %s1887, 8
                  %s1890 = scalar_lea.vmem %s1871, %s1888 [#allocation3]
                  %s1891 = scalar_lea.vmem %s1873, %s1889
                $region150: #{tpu_custom_call.1} parent=137 // loop_footer
                  %s1877 = sadd.s32 %s1875, 1
                $region151: #{tpu_custom_call.1} parent=137 // loop_footer_branch
                  %1874 = sbr.rel target = $region147
                $region152: #{tpu_custom_call.1} parent=137 // loop_exit
                  _
              $region138: #{tpu_custom_call.1} parent=115 // pred_fallthru
                _
              // Predicated region
              $region153: #{tpu_custom_call.1} parent=115 // pred_check
                _
              $region154: #{tpu_custom_call.1} parent=115 // pred_check_branch
                %1893 = sbr.rel target = $region156
              $region155: #{tpu_custom_call.1} parent=115 // pred_region
                _
              $region156: #{tpu_custom_call.1} parent=115 // pred_fallthru
                _
            $region116: #{tpu_custom_call.1} parent=111 // pred_fallthru
              _
            // Predicated region
            $region117: #{tpu_custom_call.1} parent=111 // pred_check
              _
            $region118: #{tpu_custom_call.1} parent=111 // pred_check_branch
              %1750 = sbr.rel target = $region120
            $region119: #{tpu_custom_call.1} parent=111 // pred_region
              %s1752 = sdiv.u32.pop %s1739, 13
              %s1753 = srem.u32.pop %s1739, 13
              // While loop
              $region121: #{tpu_custom_call.1} parent=119 // loop_pre_header
                _
              $region122: #{tpu_custom_call.1} parent=119 // loop_header
                %s1755 = sphi 0, %s1757
                %p1756 = scmp.ge.s32.totalorder %s1755, %s1752
                %s1760 = sphi 0, %s1791
                %s1761 = sphi %s1566, %s1794
                %s1762 = sphi %s1743, %s1795
              $region123: #{tpu_custom_call.1} parent=119 // loop_header_branch
                %1759 = sbr.rel (%p1756) target = $region127
              $region124: #{tpu_custom_call.1} parent=119 // loop_body
                %v1763 = vld [vmem:[%s1761] sm:$0xff]
                %1764 = vst [vmem:[%s1762] sm:$0xff] %v1763
                %v1765 = vld [vmem:[%s1761 + $0x8] sm:$0xff]
                %1766 = vst [vmem:[%s1762 + $0x8] sm:$0xff] %v1765
                %v1767 = vld [vmem:[%s1761 + $0x10] sm:$0xff]
                %1768 = vst [vmem:[%s1762 + $0x10] sm:$0xff] %v1767
                %v1769 = vld [vmem:[%s1761 + $0x18] sm:$0xff]
                %1770 = vst [vmem:[%s1762 + $0x18] sm:$0xff] %v1769
                %v1771 = vld [vmem:[%s1761 + $0x20] sm:$0xff]
                %1772 = vst [vmem:[%s1762 + $0x20] sm:$0xff] %v1771
                %v1773 = vld [vmem:[%s1761 + $0x28] sm:$0xff]
                %1774 = vst [vmem:[%s1762 + $0x28] sm:$0xff] %v1773
                %v1775 = vld [vmem:[%s1761 + $0x30] sm:$0xff]
                %1776 = vst [vmem:[%s1762 + $0x30] sm:$0xff] %v1775
                %v1777 = vld [vmem:[%s1761 + $0x38] sm:$0xff]
                %1778 = vst [vmem:[%s1762 + $0x38] sm:$0xff] %v1777
                %v1779 = vld [vmem:[%s1761 + $0x40] sm:$0xff]
                %1780 = vst [vmem:[%s1762 + $0x40] sm:$0xff] %v1779
                %v1781 = vld [vmem:[%s1761 + $0x48] sm:$0xff]
                %1782 = vst [vmem:[%s1762 + $0x48] sm:$0xff] %v1781
                %v1783 = vld [vmem:[%s1761 + $0x50] sm:$0xff]
                %1784 = vst [vmem:[%s1762 + $0x50] sm:$0xff] %v1783
                %v1785 = vld [vmem:[%s1761 + $0x58] sm:$0xff]
                %1786 = vst [vmem:[%s1762 + $0x58] sm:$0xff] %v1785
                %v1787 = vld [vmem:[%s1761 + $0x60] sm:$0xff]
                %1788 = vst [vmem:[%s1762 + $0x60] sm:$0xff] %v1787
                %s1789 = sadd.s32 1, %s1760
                %p1790 = scmp.ge.s32.totalorder %s1789, %s1752
                %s1791 = scalar_select %p1790, 0, %s1789
                %s1792 = smul.u32 %s1791, 104
                %s1793 = smul.u32 %s1791, 104
                %s1794 = scalar_lea.vmem %s1566, %s1792 [#allocation3]
                %s1795 = scalar_lea.vmem %s1743, %s1793
              $region125: #{tpu_custom_call.1} parent=119 // loop_footer
                %s1757 = sadd.s32 %s1755, 1
              $region126: #{tpu_custom_call.1} parent=119 // loop_footer_branch
                %1754 = sbr.rel target = $region122
              $region127: #{tpu_custom_call.1} parent=119 // loop_exit
                _
              %s1796 = sdiv.u32.pop %s1739, 13
              %s1797 = srem.u32.pop %s1739, 13
              %s1798 = smul.u32 %s1796, 13
              %s1799 = smul.u32 8, %s1798
              %s1800 = scalar_lea.vmem %s1566, %s1799 [#allocation3]
              %s1801 = smul.u32 8, %s1798
              %s1802 = scalar_lea.vmem %s1743, %s1801
              // While loop
              $region128: #{tpu_custom_call.1} parent=119 // loop_pre_header
                _
              $region129: #{tpu_custom_call.1} parent=119 // loop_header
                %s1804 = sphi 0, %s1806
                %p1805 = scmp.ge.s32.totalorder %s1804, %s1797
                %s1809 = sphi 0, %s1816
                %s1810 = sphi %s1800, %s1819
                %s1811 = sphi %s1802, %s1820
              $region130: #{tpu_custom_call.1} parent=119 // loop_header_branch
                %1808 = sbr.rel (%p1805) target = $region134
              $region131: #{tpu_custom_call.1} parent=119 // loop_body
                %v1812 = vld [vmem:[%s1810] sm:$0xff]
                %1813 = vst [vmem:[%s1811] sm:$0xff] %v1812
                %s1814 = sadd.s32 1, %s1809
                %p1815 = scmp.ge.s32.totalorder %s1814, %s1797
                %s1816 = scalar_select %p1815, 0, %s1814
                %s1817 = smul.u32 %s1816, 8
                %s1818 = smul.u32 %s1816, 8
                %s1819 = scalar_lea.vmem %s1800, %s1817 [#allocation3]
                %s1820 = scalar_lea.vmem %s1802, %s1818
              $region132: #{tpu_custom_call.1} parent=119 // loop_footer
                %s1806 = sadd.s32 %s1804, 1
              $region133: #{tpu_custom_call.1} parent=119 // loop_footer_branch
                %1803 = sbr.rel target = $region129
              $region134: #{tpu_custom_call.1} parent=119 // loop_exit
                _
            $region120: #{tpu_custom_call.1} parent=111 // pred_fallthru
              _
          $region112: #{tpu_custom_call.1} parent=107 // pred_fallthru
            _
          %1894 = vnop
        $region108: #{tpu_custom_call.1} parent=51 // pred_fallthru
          _
        // Predicated region
        $region157: #{tpu_custom_call.1} parent=51 // pred_check
          %p1895 = pneg %p270
        $region158: #{tpu_custom_call.1} parent=51 // pred_check_branch
          %1897 = sbr.rel (%p1895) target = $region160
        $region159: #{tpu_custom_call.1} parent=51 // pred_region
          %s1898 = smul.u32 13, %s22
          %s1899 = ssub.s32 25, %s1898
          %p1900 = scmp.lt.s32.totalorder %s1899, 13
          %s1901 = scalar_select %p1900, %s1899, 13
          %s1902 = smul.u32 128, %s1901
          %p1903 = scmp.ne.s32.totalorder 0, %s1902
          %s1904 = smul.addr %s1898, 8
          %s1905 = scalar_lea.vmem %s10, %s1904
          // Predicated region
          $region161: #{tpu_custom_call.1} parent=159 // pred_check
            %p1906 = pneg %p1903
          $region162: #{tpu_custom_call.1} parent=159 // pred_check_branch
            %1908 = sbr.rel (%p1906) target = $region164
          $region163: #{tpu_custom_call.1} parent=159 // pred_region
            // Predicated region
            $region165: #{tpu_custom_call.1} parent=163 // pred_check
              _
            $region166: #{tpu_custom_call.1} parent=163 // pred_check_branch
              %1910 = sbr.rel (0) target = $region168
            $region167: #{tpu_custom_call.1} parent=163 // pred_region
              // Predicated region
              $region187: #{tpu_custom_call.1} parent=167 // pred_check
                _
              $region188: #{tpu_custom_call.1} parent=167 // pred_check_branch
                %1984 = sbr.rel (0) target = $region190
              $region189: #{tpu_custom_call.1} parent=167 // pred_region
                %s1985 = sdiv.u32.pop %s1901, 13
                %s1986 = srem.u32.pop %s1901, 13
                // While loop
                $region191: #{tpu_custom_call.1} parent=189 // loop_pre_header
                  _
                $region192: #{tpu_custom_call.1} parent=189 // loop_header
                  %s1988 = sphi 0, %s1990
                  %p1989 = scmp.ge.s32.totalorder %s1988, %s1985
                  %s1993 = sphi 0, %s2024
                  %s1994 = sphi %s1570, %s2027
                  %s1995 = sphi %s1905, %s2028
                $region193: #{tpu_custom_call.1} parent=189 // loop_header_branch
                  %1992 = sbr.rel (%p1989) target = $region197
                $region194: #{tpu_custom_call.1} parent=189 // loop_body
                  %v1996 = vld [vmem:[%s1994] sm:$0xff]
                  %1997 = vst [vmem:[%s1995] sm:$0xff] %v1996
                  %v1998 = vld [vmem:[%s1994 + $0x8] sm:$0xff]
                  %1999 = vst [vmem:[%s1995 + $0x8] sm:$0xff] %v1998
                  %v2000 = vld [vmem:[%s1994 + $0x10] sm:$0xff]
                  %2001 = vst [vmem:[%s1995 + $0x10] sm:$0xff] %v2000
                  %v2002 = vld [vmem:[%s1994 + $0x18] sm:$0xff]
                  %2003 = vst [vmem:[%s1995 + $0x18] sm:$0xff] %v2002
                  %v2004 = vld [vmem:[%s1994 + $0x20] sm:$0xff]
                  %2005 = vst [vmem:[%s1995 + $0x20] sm:$0xff] %v2004
                  %v2006 = vld [vmem:[%s1994 + $0x28] sm:$0xff]
                  %2007 = vst [vmem:[%s1995 + $0x28] sm:$0xff] %v2006
                  %v2008 = vld [vmem:[%s1994 + $0x30] sm:$0xff]
                  %2009 = vst [vmem:[%s1995 + $0x30] sm:$0xff] %v2008
                  %v2010 = vld [vmem:[%s1994 + $0x38] sm:$0xff]
                  %2011 = vst [vmem:[%s1995 + $0x38] sm:$0xff] %v2010
                  %v2012 = vld [vmem:[%s1994 + $0x40] sm:$0xff]
                  %2013 = vst [vmem:[%s1995 + $0x40] sm:$0xff] %v2012
                  %v2014 = vld [vmem:[%s1994 + $0x48] sm:$0xff]
                  %2015 = vst [vmem:[%s1995 + $0x48] sm:$0xff] %v2014
                  %v2016 = vld [vmem:[%s1994 + $0x50] sm:$0xff]
                  %2017 = vst [vmem:[%s1995 + $0x50] sm:$0xff] %v2016
                  %v2018 = vld [vmem:[%s1994 + $0x58] sm:$0xff]
                  %2019 = vst [vmem:[%s1995 + $0x58] sm:$0xff] %v2018
                  %v2020 = vld [vmem:[%s1994 + $0x60] sm:$0xff]
                  %2021 = vst [vmem:[%s1995 + $0x60] sm:$0xff] %v2020
                  %s2022 = sadd.s32 1, %s1993
                  %p2023 = scmp.ge.s32.totalorder %s2022, %s1985
                  %s2024 = scalar_select %p2023, 0, %s2022
                  %s2025 = smul.u32 %s2024, 104
                  %s2026 = smul.u32 %s2024, 104
                  %s2027 = scalar_lea.vmem %s1570, %s2025 [#allocation4]
                  %s2028 = scalar_lea.vmem %s1905, %s2026
                $region195: #{tpu_custom_call.1} parent=189 // loop_footer
                  %s1990 = sadd.s32 %s1988, 1
                $region196: #{tpu_custom_call.1} parent=189 // loop_footer_branch
                  %1987 = sbr.rel target = $region192
                $region197: #{tpu_custom_call.1} parent=189 // loop_exit
                  _
                %s2029 = sdiv.u32.pop %s1901, 13
                %s2030 = srem.u32.pop %s1901, 13
                %s2031 = smul.u32 %s2029, 13
                %s2032 = smul.u32 8, %s2031
                %s2033 = scalar_lea.vmem %s1570, %s2032 [#allocation4]
                %s2034 = smul.u32 8, %s2031
                %s2035 = scalar_lea.vmem %s1905, %s2034
                // While loop
                $region198: #{tpu_custom_call.1} parent=189 // loop_pre_header
                  _
                $region199: #{tpu_custom_call.1} parent=189 // loop_header
                  %s2037 = sphi 0, %s2039
                  %p2038 = scmp.ge.s32.totalorder %s2037, %s2030
                  %s2042 = sphi 0, %s2049
                  %s2043 = sphi %s2033, %s2052
                  %s2044 = sphi %s2035, %s2053
                $region200: #{tpu_custom_call.1} parent=189 // loop_header_branch
                  %2041 = sbr.rel (%p2038) target = $region204
                $region201: #{tpu_custom_call.1} parent=189 // loop_body
                  %v2045 = vld [vmem:[%s2043] sm:$0xff]
                  %2046 = vst [vmem:[%s2044] sm:$0xff] %v2045
                  %s2047 = sadd.s32 1, %s2042
                  %p2048 = scmp.ge.s32.totalorder %s2047, %s2030
                  %s2049 = scalar_select %p2048, 0, %s2047
                  %s2050 = smul.u32 %s2049, 8
                  %s2051 = smul.u32 %s2049, 8
                  %s2052 = scalar_lea.vmem %s2033, %s2050 [#allocation4]
                  %s2053 = scalar_lea.vmem %s2035, %s2051
                $region202: #{tpu_custom_call.1} parent=189 // loop_footer
                  %s2039 = sadd.s32 %s2037, 1
                $region203: #{tpu_custom_call.1} parent=189 // loop_footer_branch
                  %2036 = sbr.rel target = $region199
                $region204: #{tpu_custom_call.1} parent=189 // loop_exit
                  _
              $region190: #{tpu_custom_call.1} parent=167 // pred_fallthru
                _
              // Predicated region
              $region205: #{tpu_custom_call.1} parent=167 // pred_check
                _
              $region206: #{tpu_custom_call.1} parent=167 // pred_check_branch
                %2055 = sbr.rel target = $region208
              $region207: #{tpu_custom_call.1} parent=167 // pred_region
                _
              $region208: #{tpu_custom_call.1} parent=167 // pred_fallthru
                _
            $region168: #{tpu_custom_call.1} parent=163 // pred_fallthru
              _
            // Predicated region
            $region169: #{tpu_custom_call.1} parent=163 // pred_check
              _
            $region170: #{tpu_custom_call.1} parent=163 // pred_check_branch
              %1912 = sbr.rel target = $region172
            $region171: #{tpu_custom_call.1} parent=163 // pred_region
              %s1914 = sdiv.u32.pop %s1901, 13
              %s1915 = srem.u32.pop %s1901, 13
              // While loop
              $region173: #{tpu_custom_call.1} parent=171 // loop_pre_header
                _
              $region174: #{tpu_custom_call.1} parent=171 // loop_header
                %s1917 = sphi 0, %s1919
                %p1918 = scmp.ge.s32.totalorder %s1917, %s1914
                %s1922 = sphi 0, %s1953
                %s1923 = sphi %s1570, %s1956
                %s1924 = sphi %s1905, %s1957
              $region175: #{tpu_custom_call.1} parent=171 // loop_header_branch
                %1921 = sbr.rel (%p1918) target = $region179
              $region176: #{tpu_custom_call.1} parent=171 // loop_body
                %v1925 = vld [vmem:[%s1923] sm:$0xff]
                %1926 = vst [vmem:[%s1924] sm:$0xff] %v1925
                %v1927 = vld [vmem:[%s1923 + $0x8] sm:$0xff]
                %1928 = vst [vmem:[%s1924 + $0x8] sm:$0xff] %v1927
                %v1929 = vld [vmem:[%s1923 + $0x10] sm:$0xff]
                %1930 = vst [vmem:[%s1924 + $0x10] sm:$0xff] %v1929
                %v1931 = vld [vmem:[%s1923 + $0x18] sm:$0xff]
                %1932 = vst [vmem:[%s1924 + $0x18] sm:$0xff] %v1931
                %v1933 = vld [vmem:[%s1923 + $0x20] sm:$0xff]
                %1934 = vst [vmem:[%s1924 + $0x20] sm:$0xff] %v1933
                %v1935 = vld [vmem:[%s1923 + $0x28] sm:$0xff]
                %1936 = vst [vmem:[%s1924 + $0x28] sm:$0xff] %v1935
                %v1937 = vld [vmem:[%s1923 + $0x30] sm:$0xff]
                %1938 = vst [vmem:[%s1924 + $0x30] sm:$0xff] %v1937
                %v1939 = vld [vmem:[%s1923 + $0x38] sm:$0xff]
                %1940 = vst [vmem:[%s1924 + $0x38] sm:$0xff] %v1939
                %v1941 = vld [vmem:[%s1923 + $0x40] sm:$0xff]
                %1942 = vst [vmem:[%s1924 + $0x40] sm:$0xff] %v1941
                %v1943 = vld [vmem:[%s1923 + $0x48] sm:$0xff]
                %1944 = vst [vmem:[%s1924 + $0x48] sm:$0xff] %v1943
                %v1945 = vld [vmem:[%s1923 + $0x50] sm:$0xff]
                %1946 = vst [vmem:[%s1924 + $0x50] sm:$0xff] %v1945
                %v1947 = vld [vmem:[%s1923 + $0x58] sm:$0xff]
                %1948 = vst [vmem:[%s1924 + $0x58] sm:$0xff] %v1947
                %v1949 = vld [vmem:[%s1923 + $0x60] sm:$0xff]
                %1950 = vst [vmem:[%s1924 + $0x60] sm:$0xff] %v1949
                %s1951 = sadd.s32 1, %s1922
                %p1952 = scmp.ge.s32.totalorder %s1951, %s1914
                %s1953 = scalar_select %p1952, 0, %s1951
                %s1954 = smul.u32 %s1953, 104
                %s1955 = smul.u32 %s1953, 104
                %s1956 = scalar_lea.vmem %s1570, %s1954 [#allocation4]
                %s1957 = scalar_lea.vmem %s1905, %s1955
              $region177: #{tpu_custom_call.1} parent=171 // loop_footer
                %s1919 = sadd.s32 %s1917, 1
              $region178: #{tpu_custom_call.1} parent=171 // loop_footer_branch
                %1916 = sbr.rel target = $region174
              $region179: #{tpu_custom_call.1} parent=171 // loop_exit
                _
              %s1958 = sdiv.u32.pop %s1901, 13
              %s1959 = srem.u32.pop %s1901, 13
              %s1960 = smul.u32 %s1958, 13
              %s1961 = smul.u32 8, %s1960
              %s1962 = scalar_lea.vmem %s1570, %s1961 [#allocation4]
              %s1963 = smul.u32 8, %s1960
              %s1964 = scalar_lea.vmem %s1905, %s1963
              // While loop
              $region180: #{tpu_custom_call.1} parent=171 // loop_pre_header
                _
              $region181: #{tpu_custom_call.1} parent=171 // loop_header
                %s1966 = sphi 0, %s1968
                %p1967 = scmp.ge.s32.totalorder %s1966, %s1959
                %s1971 = sphi 0, %s1978
                %s1972 = sphi %s1962, %s1981
                %s1973 = sphi %s1964, %s1982
              $region182: #{tpu_custom_call.1} parent=171 // loop_header_branch
                %1970 = sbr.rel (%p1967) target = $region186
              $region183: #{tpu_custom_call.1} parent=171 // loop_body
                %v1974 = vld [vmem:[%s1972] sm:$0xff]
                %1975 = vst [vmem:[%s1973] sm:$0xff] %v1974
                %s1976 = sadd.s32 1, %s1971
                %p1977 = scmp.ge.s32.totalorder %s1976, %s1959
                %s1978 = scalar_select %p1977, 0, %s1976
                %s1979 = smul.u32 %s1978, 8
                %s1980 = smul.u32 %s1978, 8
                %s1981 = scalar_lea.vmem %s1962, %s1979 [#allocation4]
                %s1982 = scalar_lea.vmem %s1964, %s1980
              $region184: #{tpu_custom_call.1} parent=171 // loop_footer
                %s1968 = sadd.s32 %s1966, 1
              $region185: #{tpu_custom_call.1} parent=171 // loop_footer_branch
                %1965 = sbr.rel target = $region181
              $region186: #{tpu_custom_call.1} parent=171 // loop_exit
                _
            $region172: #{tpu_custom_call.1} parent=163 // pred_fallthru
              _
          $region164: #{tpu_custom_call.1} parent=159 // pred_fallthru
            _
          %2056 = vnop
        $region160: #{tpu_custom_call.1} parent=51 // pred_fallthru
          _
      $region52: #{tpu_custom_call.1} parent=5 // pred_fallthru
        _
      %p2057 = scmp.le.s32.totalorder 2, %s17
      // Predicated region
      $region209: #{tpu_custom_call.1} parent=5 // pred_check
        %p2058 = pneg %p2057
      $region210: #{tpu_custom_call.1} parent=5 // pred_check_branch
        %2060 = sbr.rel (%p2058) target = $region212
      $region211: #{tpu_custom_call.1} parent=5 // pred_region
        %s2061 = ssub.s32 %s17, 2
        // Predicated region
        $region213: #{tpu_custom_call.1} parent=211 // pred_check
          %p2062 = pneg %p224
        $region214: #{tpu_custom_call.1} parent=211 // pred_check_branch
          %2064 = sbr.rel (%p2062) target = $region216
        $region215: #{tpu_custom_call.1} parent=211 // pred_region
          %s2065 = sand.u32 %s209, 1
          %s2066 = sand.u32 %s209, 1
          %s2067 = smul.addr %s2066, 104
          %s2068 = scalar_lea.vmem [#allocation2], %s2067
        $region216: #{tpu_custom_call.1} parent=211 // pred_fallthru
          _
        // Predicated region
        $region217: #{tpu_custom_call.1} parent=211 // pred_check
          %p2069 = pneg %p250
        $region218: #{tpu_custom_call.1} parent=211 // pred_check_branch
          %2071 = sbr.rel (%p2069) target = $region220
        $region219: #{tpu_custom_call.1} parent=211 // pred_region
          %s2072 = sand.u32 %s235, 1
          %s2073 = sand.u32 %s235, 1
          %s2074 = smul.addr %s2073, 104
          %s2075 = scalar_lea.vmem [#allocation3], %s2074
        $region220: #{tpu_custom_call.1} parent=211 // pred_fallthru
          _
        // Predicated region
        $region221: #{tpu_custom_call.1} parent=211 // pred_check
          %p2076 = pneg %p276
        $region222: #{tpu_custom_call.1} parent=211 // pred_check_branch
          %2078 = sbr.rel (%p2076) target = $region224
        $region223: #{tpu_custom_call.1} parent=211 // pred_region
          %s2079 = sand.u32 %s261, 1
          %s2080 = sand.u32 %s261, 1
          %s2081 = smul.addr %s2080, 104
          %s2082 = scalar_lea.vmem [#allocation4], %s2081
        $region224: #{tpu_custom_call.1} parent=211 // pred_fallthru
          _
      $region212: #{tpu_custom_call.1} parent=5 // pred_fallthru
        _
    $region6: #{tpu_custom_call.1} parent=1 // loop_footer
      %s21 = sadd.s32 1, %s17
    $region7: #{tpu_custom_call.1} parent=1 // loop_footer_branch
      %16 = sbr.rel target = $region3
    $region8: #{tpu_custom_call.1} parent=1 // loop_exit
      _

</llo_original>
